<compile_context>
chip_gen: v7x
topology: tpu7x:2x2x1
jax: 0.10.0
libtpu: 0.0.40
codegen_flags: <defaults>
</compile_context>

<pallas_src>
import functools

import numpy as np

import jax
import jax.numpy as jnp
from jax.experimental import pallas as pl
from jax.experimental.pallas import tpu as pltpu


def _round_up(x, m):
    return (x + m - 1) // m * m


# ----------------------------------------------------------------------------- kernel
def _discriminator_kernel(tap_widths, F_pad, use_pltpu_roll, emb_ref, *refs):
    """One batch tile: per-tap convs -> ReLU -> masked time max-pool -> highway -> linear."""
    n_taps = len(tap_widths)
    w_tap_refs = refs[:n_taps]
    (bias_ref, mask_ref, hw_w_ref, hw_b_ref,
     lin_w_ref, lin_b_ref, out_ref) = refs[n_taps:]

    bB, S_pad, E = emb_ref.shape
    M2 = bB * S_pad

    # (bB, S_pad, E) -> (bB*S_pad, E): free (S_pad is a multiple of 8, f32 tiling).
    emb2d = emb_ref[...].reshape(M2, E)

    # acc[b*S_pad + t, c] = sum_df emb[b, t+df, :] @ W_df[:, c]   (f32 accumulation).
    acc = jnp.dot(emb2d.astype(jnp.bfloat16), w_tap_refs[0][...],
                  preferred_element_type=jnp.float32)              # (M2, F_pad)
    for df in range(1, n_taps):
        if use_pltpu_roll:
            # == jnp.roll(emb2d, -df, axis=0): XLU sublane rotate, overlaps the MXU.
            shifted = pltpu.roll(emb2d, shift=M2 - df, axis=0)
        else:
            shifted = jnp.roll(emb2d, -df, axis=0)
        p = jnp.dot(shifted.astype(jnp.bfloat16), w_tap_refs[df][...],
                    preferred_element_type=jnp.float32)            # (M2, W_df)
        w_df = tap_widths[df]
        if w_df < F_pad:
            # Lane-aligned zero-extend (offsets / widths are multiples of 128).
            p = jnp.concatenate(
                [p, jnp.zeros((M2, F_pad - w_df), jnp.float32)], axis=-1)
        acc = acc + p

    # Bias + ReLU, zero invalid time positions per filter size (ReLU output >= 0, so
    # zeroed entries can never win the max), then max-pool over time.
    acc = acc.reshape(bB, S_pad, F_pad)
    act = jnp.maximum(acc + bias_ref[...].reshape(1, 1, F_pad), 0.0)
    act = act * mask_ref[...][None, :, :]
    pooled = jnp.max(act, axis=1)                                  # (bB, F_pad)

    # Highway (f32 epilogue; weights pre-transposed / channel-permuted / zero-padded).
    hw = jnp.dot(pooled, hw_w_ref[...],
                 preferred_element_type=jnp.float32) + hw_b_ref[...]
    sig = jax.nn.sigmoid(hw)
    pred = sig * jnp.maximum(hw, 0.0) + (1.0 - sig) * pooled

    # Dropout == identity (inference).  Final linear into a lane-dense (bB, C_pad) block.
    out_ref[...] = (jnp.dot(pred, lin_w_ref[...],
                            preferred_element_type=jnp.float32) + lin_b_ref[...])


# ----------------------------------------------------------------- host-side packing
def pack_discriminator_params(params, filter_sizes, num_filters):
    """One-time (numpy) packing of all weights into lane-dense, MXU-friendly blocks."""
    emb_dim = int(np.asarray(params['conv_w'][0]).shape[-1])
    num_classes = int(np.asarray(params['lin_w']).shape[0])
    F_total = int(sum(num_filters))
    F_pad = _round_up(F_total, 128)
    C_pad = _round_up(num_classes, 128)
    max_f = int(max(filter_sizes))

    # Sort filter groups by filter size DESCENDING so that, for every tap offset df,
    # the active channels (filters with f > df) form a prefix of the channel layout
    # -> every packed tap block starts at lane offset 0 (128-aligned accumulation).
    order = sorted(range(len(filter_sizes)), key=lambda i: -filter_sizes[i])
    f_sorted = tuple(int(filter_sizes[i]) for i in order)
    n_sorted = tuple(int(num_filters[i]) for i in order)
    starts_old = np.cumsum([0] + list(num_filters))
    perm = np.concatenate(
        [np.arange(starts_old[g], starts_old[g] + num_filters[g]) for g in order]
    ).astype(np.int64)                                   # new channel index -> old

    conv_w = [np.asarray(params['conv_w'][i], np.float32) for i in range(len(filter_sizes))]
    conv_b = np.concatenate([np.asarray(params['conv_b'][i], np.float32).reshape(-1)
                             for i in range(len(filter_sizes))])

    w_taps, tap_widths = [], []
    for df in range(max_f):
        n_df = sum(n for f, n in zip(f_sorted, n_sorted) if f > df)
        w_df = _round_up(n_df, 128)
        w = np.zeros((emb_dim, w_df), np.float32)
        col = 0
        for g, f, n in zip(order, f_sorted, n_sorted):
            if f > df:
                w[:, col:col + n] = conv_w[g][:, df, :].T        # (E, n)
                col += n
        w_taps.append(jnp.asarray(w, dtype=jnp.bfloat16))        # bf16 MXU operand
        tap_widths.append(w_df)

    bias = np.zeros((1, F_pad), np.float32)
    bias[0, :F_total] = conv_b[perm]

    hw_w = np.asarray(params['hw_w'], np.float32)
    hw_w_t = np.zeros((F_pad, F_pad), np.float32)
    hw_w_t[:F_total, :F_total] = hw_w[np.ix_(perm, perm)].T      # permuted W^T
    hw_b = np.zeros((1, F_pad), np.float32)
    hw_b[0, :F_total] = np.asarray(params['hw_b'], np.float32).reshape(-1)[perm]

    lin_w = np.asarray(params['lin_w'], np.float32)
    lin_w_t = np.zeros((F_pad, C_pad), np.float32)
    lin_w_t[:F_total, :num_classes] = lin_w[:, perm].T
    lin_b = np.zeros((1, C_pad), np.float32)
    lin_b[0, :num_classes] = np.asarray(params['lin_b'], np.float32).reshape(-1)

    packed = dict(w_taps=tuple(w_taps),
                  bias=jnp.asarray(bias), hw_w_t=jnp.asarray(hw_w_t),
                  hw_b=jnp.asarray(hw_b), lin_w_t=jnp.asarray(lin_w_t),
                  lin_b=jnp.asarray(lin_b))
    meta = dict(F_total=F_total, F_pad=F_pad, C_pad=C_pad,
                tap_widths=tuple(tap_widths), f_sorted=f_sorted, n_sorted=n_sorted,
                num_classes=num_classes)
    return packed, meta


# ------------------------------------------------------------------------ tiling plan
def _plan_tiles(B, S_pad, E, F_pad, C_pad, tap_widths):
    try:
        cap = int(getattr(pltpu.get_tpu_info(), "vmem_capacity_bytes"))
    except Exception:
        cap = 64 << 20                                   # conservative (v7x) fallback
    vmem_limit = int(min(cap * 3 // 4, 100 << 20))       # v5e/v6e ~96 MiB, v7x ~48 MiB

    # Resident weight blocks (count x2 in case single-buffering is not honored).
    resident = 2 * (sum(E * w * 2 for w in tap_widths)               # bf16 conv taps
                    + (F_pad * F_pad + S_pad * F_pad + F_pad * C_pad
                       + 3 * F_pad + 2 * C_pad) * 4)                 # f32 epilogue blocks
    # Per batch-row VMEM per grid step: double-buffered f32 emb tile, rolled + bf16
    # temporaries, accumulator + one tap partial + activation temp, small vectors.
    per_row = (2 * S_pad * E * 4 + S_pad * E * (4 + 2)
               + 3 * S_pad * F_pad * 4 + 16 * F_pad * 4 + 4 * C_pad * 4)

    avail = max(int(vmem_limit * 0.8) - resident, 8 * per_row)
    bB_mem = max(8, min(512, (avail // per_row) // 8 * 8))

    if B <= 8:
        bB = B                                           # one full block, no batch pad
    else:
        target_steps = 4 if B >= 32 else 2               # >= 2 steps: megacore + pipelining
        bB = max(8, min(bB_mem, _round_up(-(-B // target_steps), 8)))
    B_pad = _round_up(B, bB)
    return bB, B_pad, vmem_limit


# ---------------------------------------------------------------------------- forward
def _forward_impl(emb, packed, *, meta, fast):
    B, S, E = emb.shape
    F_pad, C_pad = meta['F_pad'], meta['C_pad']
    tap_widths = meta['tap_widths']
    num_classes = meta['num_classes']

    S_pad = _round_up(S, 8)
    bB, B_pad, vmem_limit = _plan_tiles(B, S_pad, E, F_pad, C_pad, tap_widths)

    emb = emb.astype(jnp.float32)
    if (B_pad, S_pad) != (B, S):
        # Only pad when required; padded rows never reach a valid, unmasked position.
        emb = jnp.pad(emb, ((0, B_pad - B), (0, S_pad - S), (0, 0)))

    # Validity mask: 1 where time t is a valid conv position for that channel's filter
    # (channels in the sorted/permuted layout); 0 for padded channels / time rows.
    mask_np = np.zeros((S_pad, F_pad), np.float32)
    col = 0
    for f, n in zip(meta['f_sorted'], meta['n_sorted']):
        mask_np[:max(S - f + 1, 0), col:col + n] = 1.0
        col += n
    mask = jnp.asarray(mask_np)

    def const_spec(shape):
        if fast:  # resident weights never change across grid steps -> single buffer
            return pl.BlockSpec(shape, lambda i: (0, 0), pipeline_mode=pl.Buffered(1))
        return pl.BlockSpec(shape, lambda i: (0, 0))

    in_specs = [pl.BlockSpec((bB, S_pad, E), lambda i: (i, 0, 0))]   # pipelined emb tile
    in_specs += [const_spec(w.shape) for w in packed['w_taps']]
    in_specs += [const_spec(packed['bias'].shape), const_spec(mask.shape),
                 const_spec(packed['hw_w_t'].shape), const_spec(packed['hw_b'].shape),
                 const_spec(packed['lin_w_t'].shape), const_spec(packed['lin_b'].shape)]

    kernel = functools.partial(_discriminator_kernel, tap_widths, F_pad, fast)

    out = pl.pallas_call(
        kernel,
        out_shape=jax.ShapeDtypeStruct((B_pad, C_pad), jnp.float32),
        grid=(B_pad // bB,),
        in_specs=in_specs,
        out_specs=pl.BlockSpec((bB, C_pad), lambda i: (i, 0)),
        compiler_params=pltpu.CompilerParams(
            dimension_semantics=("parallel",),           # megacore split over batch tiles
            vmem_limit_bytes=vmem_limit),
    )(emb, *packed['w_taps'], packed['bias'], mask,
      packed['hw_w_t'], packed['hw_b'], packed['lin_w_t'], packed['lin_b'])

    return out[:B, :num_classes]


def make_discriminator_forward(params, filter_sizes, num_filters):
    """Packs weights once (host-side numpy) and returns a jitted forward(emb) callable."""
    packed, meta = pack_discriminator_params(params, filter_sizes, num_filters)
    fwd_fast = jax.jit(functools.partial(_forward_impl, meta=meta, fast=True))
    fwd_safe = jax.jit(functools.partial(_forward_impl, meta=meta, fast=False))
    state = {'fn': None}

    def forward(emb):
        if state['fn'] is None:
            try:  # fast path: pl.Buffered(1) + pltpu.roll; fall back once if rejected.
                out = jax.block_until_ready(fwd_fast(emb, packed))
                state['fn'] = fwd_fast
                return out
            except Exception:
                state['fn'] = fwd_safe
        return state['fn'](emb, packed)

    return forward


# -------------------------------------------------------------------------- reference
def discriminator_reference(emb, params, filter_sizes, bf16_conv=False):
    """Pure-JAX reference (HIGHEST precision). bf16_conv=True rounds the conv-stage
    inputs to bf16 first, matching the kernel's MXU operand precision exactly."""
    hi = jax.lax.Precision.HIGHEST
    rd = (lambda x: x.astype(jnp.bfloat16).astype(jnp.float32)) if bf16_conv else (lambda x: x)
    emb_c = rd(emb.astype(jnp.float32))
    pooled = []
    for i, f in enumerate(filter_sizes):
        w = rd(params['conv_w'][i].astype(jnp.float32))
        b = params['conv_b'][i].astype(jnp.float32)
        L = emb.shape[1] - f + 1
        acc = jnp.zeros((emb.shape[0], L, w.shape[0]), jnp.float32)
        for df in range(f):
            acc = acc + jnp.einsum('ble,ne->bln', emb_c[:, df:df + L, :], w[:, df, :],
                                   precision=hi)
        acc = jax.nn.relu(acc + b.reshape(1, 1, -1))
        pooled.append(jnp.max(acc, axis=1))
    pred = jnp.concatenate(pooled, axis=-1)
    hw = jnp.matmul(pred, params['hw_w'].astype(jnp.float32).T, precision=hi) + params['hw_b']
    s = jax.nn.sigmoid(hw)
    pred = s * jax.nn.relu(hw) + (1.0 - s) * pred
    return jnp.matmul(pred, params['lin_w'].astype(jnp.float32).T, precision=hi) + params['lin_b']


def init_params(key, filter_sizes, num_filters, emb_dim, num_classes):
    """Mirrors Discriminator.init_parameters(): every param ~ U(-0.05, 0.05)."""
    f_total = sum(num_filters)
    params = {'conv_w': [], 'conv_b': []}

    def u(k, shape):
        return jax.random.uniform(k, shape, jnp.float32, minval=-0.05, maxval=0.05)

    keys = jax.random.split(key, 2 * len(filter_sizes) + 4)
    ki = 0
    for n, f in zip(num_filters, filter_sizes):
        # torch Conv2d weight is (n, 1, f, emb_dim); squeeze the in_channels dim.
        params['conv_w'].append(u(keys[ki], (n, f, emb_dim))); ki += 1
        params['conv_b'].append(u(keys[ki], (1, n))); ki += 1
    params['hw_w'] = u(keys[ki], (f_total, f_total)); ki += 1
    params['hw_b'] = u(keys[ki], (1, f_total)); ki += 1
    params['lin_w'] = u(keys[ki], (num_classes, f_total)); ki += 1
    params['lin_b'] = u(keys[ki], (1, num_classes)); ki += 1
    return params


if __name__ == "__main__":
    # Small, module-consistent shapes.
    B, S, E = 2, 16, 32
    filter_sizes = (2, 3)
    num_filters = (8, 8)
    num_classes = 2

    key = jax.random.PRNGKey(0)
    k_emb, k_par = jax.random.split(key)
    emb = jax.random.normal(k_emb, (B, S, E), jnp.float32)
    params = init_params(k_par, filter_sizes, num_filters, E, num_classes)

    forward = make_discriminator_forward(params, filter_sizes, num_filters)
    score = jax.block_until_ready(forward(emb))
    assert score.shape == (B, num_classes)

    # Tight check: reference with conv inputs rounded to bf16 exactly like the kernel's
    # MXU operands (f32 accumulation / epilogue everywhere).
    ref_bf16 = discriminator_reference(emb, params, filter_sizes, bf16_conv=True)
    assert jnp.allclose(score, ref_bf16, atol=5e-4, rtol=5e-4), (score, ref_bf16)

    # Loose sanity check against the full-f32 reference (only diff: bf16 MXU inputs).
    ref_f32 = discriminator_reference(emb, params, filter_sizes, bf16_conv=False)
    assert jnp.allclose(score, ref_f32, atol=2e-2, rtol=2e-2), (score, ref_f32)

    print("KERNEL_OK")
</pallas_src>

<mosaic_0001>
module attributes {stable_mosaic.version = 11 : i64} {
  func.func @_discriminator_kernel(%arg0: i32, %arg1: memref<2x16x32xf32, #tpu.memory_space<vmem>>, %arg2: memref<32x128xbf16, #tpu.memory_space<vmem>>, %arg3: memref<32x128xbf16, #tpu.memory_space<vmem>>, %arg4: memref<32x128xbf16, #tpu.memory_space<vmem>>, %arg5: memref<1x128xf32, #tpu.memory_space<vmem>>, %arg6: memref<16x128xf32, #tpu.memory_space<vmem>>, %arg7: memref<128x128xf32, #tpu.memory_space<vmem>>, %arg8: memref<1x128xf32, #tpu.memory_space<vmem>>, %arg9: memref<128x128xf32, #tpu.memory_space<vmem>>, %arg10: memref<1x128xf32, #tpu.memory_space<vmem>>, %arg11: memref<2x128xf32, #tpu.memory_space<vmem>>) attributes {dimension_semantics = [#tpu.dimension_semantics<parallel>], iteration_bounds = array<i64: 1>, scalar_prefetch = 0 : i64, scratch_operands = 0 : i64, tpu.core_type = #tpu.core_type<tc>, window_params = [{transform_indices = @transform_0, window_bounds = array<i64: 2, 16, 32>}, {pipeline_mode = #tpu.pipeline_mode<synchronous>, transform_indices = @transform_1, window_bounds = array<i64: 32, 128>}, {pipeline_mode = #tpu.pipeline_mode<synchronous>, transform_indices = @transform_2, window_bounds = array<i64: 32, 128>}, {pipeline_mode = #tpu.pipeline_mode<synchronous>, transform_indices = @transform_3, window_bounds = array<i64: 32, 128>}, {pipeline_mode = #tpu.pipeline_mode<synchronous>, transform_indices = @transform_4, window_bounds = array<i64: 1, 128>}, {pipeline_mode = #tpu.pipeline_mode<synchronous>, transform_indices = @transform_5, window_bounds = array<i64: 16, 128>}, {pipeline_mode = #tpu.pipeline_mode<synchronous>, transform_indices = @transform_6, window_bounds = array<i64: 128, 128>}, {pipeline_mode = #tpu.pipeline_mode<synchronous>, transform_indices = @transform_7, window_bounds = array<i64: 1, 128>}, {pipeline_mode = #tpu.pipeline_mode<synchronous>, transform_indices = @transform_8, window_bounds = array<i64: 128, 128>}, {pipeline_mode = #tpu.pipeline_mode<synchronous>, transform_indices = @transform_9, window_bounds = array<i64: 1, 128>}, {transform_indices = @transform_10, window_bounds = array<i64: 2, 128>}]} {
    %c0 = arith.constant 0 : index
    %c0_0 = arith.constant 0 : index
    %c0_1 = arith.constant 0 : index
    %0 = vector.load %arg1[%c0, %c0_0, %c0_1] : memref<2x16x32xf32, #tpu.memory_space<vmem>>, vector<2x16x32xf32>
    %1 = vector.shape_cast %0 : vector<2x16x32xf32> to vector<32x32xf32>
    %2 = arith.truncf %1 : vector<32x32xf32> to vector<32x32xbf16>
    %c0_2 = arith.constant 0 : index
    %c0_3 = arith.constant 0 : index
    %3 = vector.load %arg2[%c0_2, %c0_3] : memref<32x128xbf16, #tpu.memory_space<vmem>>, vector<32x128xbf16>
    %cst = arith.constant dense<0.000000e+00> : vector<32x128xf32>
    %4 = tpu.matmul %2, %3, %cst {dimension_numbers = #tpu.dot_dimension_numbers<[1], [0], [0], [1], [0, 0, 1, 1], [], []>} : vector<32x32xbf16>, vector<32x128xbf16>, vector<32x128xf32> -> vector<32x128xf32>
    %c31_i32 = arith.constant 31 : i32
    %5 = tpu.dynamic_rotate %1 by %c31_i32 dim 0 : vector<32x32xf32>, i32 -> vector<32x32xf32>
    %6 = arith.truncf %5 : vector<32x32xf32> to vector<32x32xbf16>
    %c0_4 = arith.constant 0 : index
    %c0_5 = arith.constant 0 : index
    %7 = vector.load %arg3[%c0_4, %c0_5] : memref<32x128xbf16, #tpu.memory_space<vmem>>, vector<32x128xbf16>
    %cst_6 = arith.constant dense<0.000000e+00> : vector<32x128xf32>
    %8 = tpu.matmul %6, %7, %cst_6 {dimension_numbers = #tpu.dot_dimension_numbers<[1], [0], [0], [1], [0, 0, 1, 1], [], []>} : vector<32x32xbf16>, vector<32x128xbf16>, vector<32x128xf32> -> vector<32x128xf32>
    %9 = arith.addf %4, %8 : vector<32x128xf32>
    %c30_i32 = arith.constant 30 : i32
    %10 = tpu.dynamic_rotate %1 by %c30_i32 dim 0 : vector<32x32xf32>, i32 -> vector<32x32xf32>
    %11 = arith.truncf %10 : vector<32x32xf32> to vector<32x32xbf16>
    %c0_7 = arith.constant 0 : index
    %c0_8 = arith.constant 0 : index
    %12 = vector.load %arg4[%c0_7, %c0_8] : memref<32x128xbf16, #tpu.memory_space<vmem>>, vector<32x128xbf16>
    %cst_9 = arith.constant dense<0.000000e+00> : vector<32x128xf32>
    %13 = tpu.matmul %11, %12, %cst_9 {dimension_numbers = #tpu.dot_dimension_numbers<[1], [0], [0], [1], [0, 0, 1, 1], [], []>} : vector<32x32xbf16>, vector<32x128xbf16>, vector<32x128xf32> -> vector<32x128xf32>
    %14 = arith.addf %9, %13 : vector<32x128xf32>
    %15 = vector.shape_cast %14 : vector<32x128xf32> to vector<2x16x128xf32>
    %c0_10 = arith.constant 0 : index
    %c0_11 = arith.constant 0 : index
    %16 = vector.load %arg5[%c0_10, %c0_11] : memref<1x128xf32, #tpu.memory_space<vmem>>, vector<1x128xf32>
    %17 = vector.shape_cast %16 : vector<1x128xf32> to vector<1x1x128xf32>
    %18 = vector.broadcast %17 : vector<1x1x128xf32> to vector<2x16x128xf32>
    %19 = arith.addf %15, %18 : vector<2x16x128xf32>
    %cst_12 = arith.constant 0.000000e+00 : f32
    %20 = vector.broadcast %cst_12 : f32 to vector<2x16x128xf32>
    %21 = arith.maximumf %19, %20 : vector<2x16x128xf32>
    %c0_13 = arith.constant 0 : index
    %c0_14 = arith.constant 0 : index
    %22 = vector.load %arg6[%c0_13, %c0_14] : memref<16x128xf32, #tpu.memory_space<vmem>>, vector<16x128xf32>
    %23 = vector.shape_cast %22 : vector<16x128xf32> to vector<1x16x128xf32>
    %24 = vector.broadcast %23 : vector<1x16x128xf32> to vector<2x16x128xf32>
    %25 = arith.mulf %21, %24 : vector<2x16x128xf32>
    %cst_15 = arith.constant dense<0xFF800000> : vector<2x128xf32>
    %26 = vector.multi_reduction <maximumf>, %25, %cst_15 [1] : vector<2x16x128xf32> to vector<2x128xf32>
    %c0_16 = arith.constant 0 : index
    %c0_17 = arith.constant 0 : index
    %27 = vector.load %arg7[%c0_16, %c0_17] : memref<128x128xf32, #tpu.memory_space<vmem>>, vector<128x128xf32>
    %cst_18 = arith.constant dense<0.000000e+00> : vector<2x128xf32>
    %28 = tpu.matmul %26, %27, %cst_18 {dimension_numbers = #tpu.dot_dimension_numbers<[1], [0], [0], [1], [0, 0, 1, 1], [], []>} : vector<2x128xf32>, vector<128x128xf32>, vector<2x128xf32> -> vector<2x128xf32>
    %c0_19 = arith.constant 0 : index
    %c0_20 = arith.constant 0 : index
    %29 = vector.load %arg8[%c0_19, %c0_20] : memref<1x128xf32, #tpu.memory_space<vmem>>, vector<1x128xf32>
    %30 = vector.broadcast %29 : vector<1x128xf32> to vector<2x128xf32>
    %31 = arith.addf %28, %30 : vector<2x128xf32>
    %32 = arith.negf %31 : vector<2x128xf32>
    %33 = math.exp %32 : vector<2x128xf32>
    %cst_21 = arith.constant 1.000000e+00 : f32
    %34 = vector.broadcast %cst_21 : f32 to vector<2x128xf32>
    %35 = arith.addf %34, %33 : vector<2x128xf32>
    %36 = arith.divf %34, %35 : vector<2x128xf32>
    %cst_22 = arith.constant 0.000000e+00 : f32
    %37 = vector.broadcast %cst_22 : f32 to vector<2x128xf32>
    %38 = arith.maximumf %31, %37 : vector<2x128xf32>
    %39 = arith.mulf %36, %38 : vector<2x128xf32>
    %cst_23 = arith.constant 1.000000e+00 : f32
    %40 = vector.broadcast %cst_23 : f32 to vector<2x128xf32>
    %41 = arith.subf %40, %36 : vector<2x128xf32>
    %42 = arith.mulf %41, %26 : vector<2x128xf32>
    %43 = arith.addf %39, %42 : vector<2x128xf32>
    %c0_24 = arith.constant 0 : index
    %c0_25 = arith.constant 0 : index
    %44 = vector.load %arg9[%c0_24, %c0_25] : memref<128x128xf32, #tpu.memory_space<vmem>>, vector<128x128xf32>
    %cst_26 = arith.constant dense<0.000000e+00> : vector<2x128xf32>
    %45 = tpu.matmul %43, %44, %cst_26 {dimension_numbers = #tpu.dot_dimension_numbers<[1], [0], [0], [1], [0, 0, 1, 1], [], []>} : vector<2x128xf32>, vector<128x128xf32>, vector<2x128xf32> -> vector<2x128xf32>
    %c0_27 = arith.constant 0 : index
    %c0_28 = arith.constant 0 : index
    %46 = vector.load %arg10[%c0_27, %c0_28] : memref<1x128xf32, #tpu.memory_space<vmem>>, vector<1x128xf32>
    %47 = vector.broadcast %46 : vector<1x128xf32> to vector<2x128xf32>
    %48 = arith.addf %45, %47 : vector<2x128xf32>
    %c0_29 = arith.constant 0 : index
    %c0_30 = arith.constant 0 : index
    %49 = vector.load %arg11[%c0_29, %c0_30] : memref<2x128xf32, #tpu.memory_space<vmem>>, vector<2x128xf32>
    tpu.vector_store %arg11[%c0_29, %c0_30], %48 {strides = array<i32>} : memref<2x128xf32, #tpu.memory_space<vmem>>, vector<2x128xf32>,
    return
  }
  func.func @transform_0(%arg0: i32) -> (i32, i32, i32) {
    %c0_i32 = arith.constant 0 : i32
    %c0_i32_0 = arith.constant 0 : i32
    %c0_i32_1 = arith.constant 0 : i32
    return %arg0, %c0_i32, %c0_i32_0 : i32, i32, i32
  }
  func.func @transform_1(%arg0: i32) -> (i32, i32) {
    %c0_i32 = arith.constant 0 : i32
    %c0_i32_0 = arith.constant 0 : i32
    %c0_i32_1 = arith.constant 0 : i32
    return %c0_i32, %c0_i32_0 : i32, i32
  }
  func.func @transform_2(%arg0: i32) -> (i32, i32) {
    %c0_i32 = arith.constant 0 : i32
    %c0_i32_0 = arith.constant 0 : i32
    %c0_i32_1 = arith.constant 0 : i32
    return %c0_i32, %c0_i32_0 : i32, i32
  }
  func.func @transform_3(%arg0: i32) -> (i32, i32) {
    %c0_i32 = arith.constant 0 : i32
    %c0_i32_0 = arith.constant 0 : i32
    %c0_i32_1 = arith.constant 0 : i32
    return %c0_i32, %c0_i32_0 : i32, i32
  }
  func.func @transform_4(%arg0: i32) -> (i32, i32) {
    %c0_i32 = arith.constant 0 : i32
    %c0_i32_0 = arith.constant 0 : i32
    %c0_i32_1 = arith.constant 0 : i32
    return %c0_i32, %c0_i32_0 : i32, i32
  }
  func.func @transform_5(%arg0: i32) -> (i32, i32) {
    %c0_i32 = arith.constant 0 : i32
    %c0_i32_0 = arith.constant 0 : i32
    %c0_i32_1 = arith.constant 0 : i32
    return %c0_i32, %c0_i32_0 : i32, i32
  }
  func.func @transform_6(%arg0: i32) -> (i32, i32) {
    %c0_i32 = arith.constant 0 : i32
    %c0_i32_0 = arith.constant 0 : i32
    %c0_i32_1 = arith.constant 0 : i32
    return %c0_i32, %c0_i32_0 : i32, i32
  }
  func.func @transform_7(%arg0: i32) -> (i32, i32) {
    %c0_i32 = arith.constant 0 : i32
    %c0_i32_0 = arith.constant 0 : i32
    %c0_i32_1 = arith.constant 0 : i32
    return %c0_i32, %c0_i32_0 : i32, i32
  }
  func.func @transform_8(%arg0: i32) -> (i32, i32) {
    %c0_i32 = arith.constant 0 : i32
    %c0_i32_0 = arith.constant 0 : i32
    %c0_i32_1 = arith.constant 0 : i32
    return %c0_i32, %c0_i32_0 : i32, i32
  }
  func.func @transform_9(%arg0: i32) -> (i32, i32) {
    %c0_i32 = arith.constant 0 : i32
    %c0_i32_0 = arith.constant 0 : i32
    %c0_i32_1 = arith.constant 0 : i32
    return %c0_i32, %c0_i32_0 : i32, i32
  }
  func.func @transform_10(%arg0: i32) -> (i32, i32) {
    %c0_i32 = arith.constant 0 : i32
    %c0_i32_0 = arith.constant 0 : i32
    return %arg0, %c0_i32 : i32, i32
  }
}

module attributes {stable_mosaic.version = 11 : i64} {
  func.func @_discriminator_kernel(%arg0: i32, %arg1: memref<2x16x32xf32, #tpu.memory_space<vmem>>, %arg2: memref<32x128xbf16, #tpu.memory_space<vmem>>, %arg3: memref<32x128xbf16, #tpu.memory_space<vmem>>, %arg4: memref<32x128xbf16, #tpu.memory_space<vmem>>, %arg5: memref<1x128xf32, #tpu.memory_space<vmem>>, %arg6: memref<16x128xf32, #tpu.memory_space<vmem>>, %arg7: memref<128x128xf32, #tpu.memory_space<vmem>>, %arg8: memref<1x128xf32, #tpu.memory_space<vmem>>, %arg9: memref<128x128xf32, #tpu.memory_space<vmem>>, %arg10: memref<1x128xf32, #tpu.memory_space<vmem>>, %arg11: memref<2x128xf32, #tpu.memory_space<vmem>>) attributes {dimension_semantics = [#tpu.dimension_semantics<parallel>], iteration_bounds = array<i64: 1>, scalar_prefetch = 0 : i64, scratch_operands = 0 : i64, tpu.core_type = #tpu.core_type<tc>, window_params = [{transform_indices = @transform_0, window_bounds = array<i64: 2, 16, 32>}, {pipeline_mode = #tpu.pipeline_mode<synchronous>, transform_indices = @transform_1, window_bounds = array<i64: 32, 128>}, {pipeline_mode = #tpu.pipeline_mode<synchronous>, transform_indices = @transform_2, window_bounds = array<i64: 32, 128>}, {pipeline_mode = #tpu.pipeline_mode<synchronous>, transform_indices = @transform_3, window_bounds = array<i64: 32, 128>}, {pipeline_mode = #tpu.pipeline_mode<synchronous>, transform_indices = @transform_4, window_bounds = array<i64: 1, 128>}, {pipeline_mode = #tpu.pipeline_mode<synchronous>, transform_indices = @transform_5, window_bounds = array<i64: 16, 128>}, {pipeline_mode = #tpu.pipeline_mode<synchronous>, transform_indices = @transform_6, window_bounds = array<i64: 128, 128>}, {pipeline_mode = #tpu.pipeline_mode<synchronous>, transform_indices = @transform_7, window_bounds = array<i64: 1, 128>}, {pipeline_mode = #tpu.pipeline_mode<synchronous>, transform_indices = @transform_8, window_bounds = array<i64: 128, 128>}, {pipeline_mode = #tpu.pipeline_mode<synchronous>, transform_indices = @transform_9, window_bounds = array<i64: 1, 128>}, {transform_indices = @transform_10, window_bounds = array<i64: 2, 128>}]} {
    %c0 = arith.constant 0 : index
    %c0_0 = arith.constant 0 : index
    %c0_1 = arith.constant 0 : index
    %0 = vector.load %arg1[%c0, %c0_0, %c0_1] : memref<2x16x32xf32, #tpu.memory_space<vmem>>, vector<2x16x32xf32>
    %1 = vector.shape_cast %0 : vector<2x16x32xf32> to vector<32x32xf32>
    %2 = arith.truncf %1 : vector<32x32xf32> to vector<32x32xbf16>
    %c0_2 = arith.constant 0 : index
    %c0_3 = arith.constant 0 : index
    %3 = vector.load %arg2[%c0_2, %c0_3] : memref<32x128xbf16, #tpu.memory_space<vmem>>, vector<32x128xbf16>
    %cst = arith.constant dense<0.000000e+00> : vector<32x128xf32>
    %4 = tpu.matmul %2, %3, %cst {dimension_numbers = #tpu.dot_dimension_numbers<[1], [0], [0], [1], [0, 0, 1, 1], [], []>} : vector<32x32xbf16>, vector<32x128xbf16>, vector<32x128xf32> -> vector<32x128xf32>
    %5 = vector.extract_strided_slice %1 {offsets = [1, 0], sizes = [31, 32], strides = [1, 1]} : vector<32x32xf32> to vector<31x32xf32>
    %6 = vector.extract_strided_slice %1 {offsets = [0, 0], sizes = [1, 32], strides = [1, 1]} : vector<32x32xf32> to vector<1x32xf32>
    %7 = tpu.concatenate %5, %6 in 0 : vector<31x32xf32>, vector<1x32xf32> -> vector<32x32xf32>
    %8 = arith.truncf %7 : vector<32x32xf32> to vector<32x32xbf16>
    %c0_4 = arith.constant 0 : index
    %c0_5 = arith.constant 0 : index
    %9 = vector.load %arg3[%c0_4, %c0_5] : memref<32x128xbf16, #tpu.memory_space<vmem>>, vector<32x128xbf16>
    %cst_6 = arith.constant dense<0.000000e+00> : vector<32x128xf32>
    %10 = tpu.matmul %8, %9, %cst_6 {dimension_numbers = #tpu.dot_dimension_numbers<[1], [0], [0], [1], [0, 0, 1, 1], [], []>} : vector<32x32xbf16>, vector<32x128xbf16>, vector<32x128xf32> -> vector<32x128xf32>
    %11 = arith.addf %4, %10 : vector<32x128xf32>
    %12 = vector.extract_strided_slice %1 {offsets = [2, 0], sizes = [30, 32], strides = [1, 1]} : vector<32x32xf32> to vector<30x32xf32>
    %13 = vector.extract_strided_slice %1 {offsets = [0, 0], sizes = [2, 32], strides = [1, 1]} : vector<32x32xf32> to vector<2x32xf32>
    %14 = tpu.concatenate %12, %13 in 0 : vector<30x32xf32>, vector<2x32xf32> -> vector<32x32xf32>
    %15 = arith.truncf %14 : vector<32x32xf32> to vector<32x32xbf16>
    %c0_7 = arith.constant 0 : index
    %c0_8 = arith.constant 0 : index
    %16 = vector.load %arg4[%c0_7, %c0_8] : memref<32x128xbf16, #tpu.memory_space<vmem>>, vector<32x128xbf16>
    %cst_9 = arith.constant dense<0.000000e+00> : vector<32x128xf32>
    %17 = tpu.matmul %15, %16, %cst_9 {dimension_numbers = #tpu.dot_dimension_numbers<[1], [0], [0], [1], [0, 0, 1, 1], [], []>} : vector<32x32xbf16>, vector<32x128xbf16>, vector<32x128xf32> -> vector<32x128xf32>
    %18 = arith.addf %11, %17 : vector<32x128xf32>
    %19 = vector.shape_cast %18 : vector<32x128xf32> to vector<2x16x128xf32>
    %c0_10 = arith.constant 0 : index
    %c0_11 = arith.constant 0 : index
    %20 = vector.load %arg5[%c0_10, %c0_11] : memref<1x128xf32, #tpu.memory_space<vmem>>, vector<1x128xf32>
    %21 = vector.shape_cast %20 : vector<1x128xf32> to vector<1x1x128xf32>
    %22 = vector.broadcast %21 : vector<1x1x128xf32> to vector<2x16x128xf32>
    %23 = arith.addf %19, %22 : vector<2x16x128xf32>
    %cst_12 = arith.constant 0.000000e+00 : f32
    %24 = vector.broadcast %cst_12 : f32 to vector<2x16x128xf32>
    %25 = arith.maximumf %23, %24 : vector<2x16x128xf32>
    %c0_13 = arith.constant 0 : index
    %c0_14 = arith.constant 0 : index
    %26 = vector.load %arg6[%c0_13, %c0_14] : memref<16x128xf32, #tpu.memory_space<vmem>>, vector<16x128xf32>
    %27 = vector.shape_cast %26 : vector<16x128xf32> to vector<1x16x128xf32>
    %28 = vector.broadcast %27 : vector<1x16x128xf32> to vector<2x16x128xf32>
    %29 = arith.mulf %25, %28 : vector<2x16x128xf32>
    %cst_15 = arith.constant dense<0xFF800000> : vector<2x128xf32>
    %30 = vector.multi_reduction <maximumf>, %29, %cst_15 [1] : vector<2x16x128xf32> to vector<2x128xf32>
    %c0_16 = arith.constant 0 : index
    %c0_17 = arith.constant 0 : index
    %31 = vector.load %arg7[%c0_16, %c0_17] : memref<128x128xf32, #tpu.memory_space<vmem>>, vector<128x128xf32>
    %cst_18 = arith.constant dense<0.000000e+00> : vector<2x128xf32>
    %32 = tpu.matmul %30, %31, %cst_18 {dimension_numbers = #tpu.dot_dimension_numbers<[1], [0], [0], [1], [0, 0, 1, 1], [], []>} : vector<2x128xf32>, vector<128x128xf32>, vector<2x128xf32> -> vector<2x128xf32>
    %c0_19 = arith.constant 0 : index
    %c0_20 = arith.constant 0 : index
    %33 = vector.load %arg8[%c0_19, %c0_20] : memref<1x128xf32, #tpu.memory_space<vmem>>, vector<1x128xf32>
    %34 = vector.broadcast %33 : vector<1x128xf32> to vector<2x128xf32>
    %35 = arith.addf %32, %34 : vector<2x128xf32>
    %36 = arith.negf %35 : vector<2x128xf32>
    %37 = math.exp %36 : vector<2x128xf32>
    %cst_21 = arith.constant 1.000000e+00 : f32
    %38 = vector.broadcast %cst_21 : f32 to vector<2x128xf32>
    %39 = arith.addf %38, %37 : vector<2x128xf32>
    %40 = arith.divf %38, %39 : vector<2x128xf32>
    %cst_22 = arith.constant 0.000000e+00 : f32
    %41 = vector.broadcast %cst_22 : f32 to vector<2x128xf32>
    %42 = arith.maximumf %35, %41 : vector<2x128xf32>
    %43 = arith.mulf %40, %42 : vector<2x128xf32>
    %cst_23 = arith.constant 1.000000e+00 : f32
    %44 = vector.broadcast %cst_23 : f32 to vector<2x128xf32>
    %45 = arith.subf %44, %40 : vector<2x128xf32>
    %46 = arith.mulf %45, %30 : vector<2x128xf32>
    %47 = arith.addf %43, %46 : vector<2x128xf32>
    %c0_24 = arith.constant 0 : index
    %c0_25 = arith.constant 0 : index
    %48 = vector.load %arg9[%c0_24, %c0_25] : memref<128x128xf32, #tpu.memory_space<vmem>>, vector<128x128xf32>
    %cst_26 = arith.constant dense<0.000000e+00> : vector<2x128xf32>
    %49 = tpu.matmul %47, %48, %cst_26 {dimension_numbers = #tpu.dot_dimension_numbers<[1], [0], [0], [1], [0, 0, 1, 1], [], []>} : vector<2x128xf32>, vector<128x128xf32>, vector<2x128xf32> -> vector<2x128xf32>
    %c0_27 = arith.constant 0 : index
    %c0_28 = arith.constant 0 : index
    %50 = vector.load %arg10[%c0_27, %c0_28] : memref<1x128xf32, #tpu.memory_space<vmem>>, vector<1x128xf32>
    %51 = vector.broadcast %50 : vector<1x128xf32> to vector<2x128xf32>
    %52 = arith.addf %49, %51 : vector<2x128xf32>
    %c0_29 = arith.constant 0 : index
    %c0_30 = arith.constant 0 : index
    %53 = vector.load %arg11[%c0_29, %c0_30] : memref<2x128xf32, #tpu.memory_space<vmem>>, vector<2x128xf32>
    tpu.vector_store %arg11[%c0_29, %c0_30], %52 {strides = array<i32>} : memref<2x128xf32, #tpu.memory_space<vmem>>, vector<2x128xf32>,
    return
  }
  func.func @transform_0(%arg0: i32) -> (i32, i32, i32) {
    %c0_i32 = arith.constant 0 : i32
    %c0_i32_0 = arith.constant 0 : i32
    %c0_i32_1 = arith.constant 0 : i32
    return %arg0, %c0_i32, %c0_i32_0 : i32, i32, i32
  }
  func.func @transform_1(%arg0: i32) -> (i32, i32) {
    %c0_i32 = arith.constant 0 : i32
    %c0_i32_0 = arith.constant 0 : i32
    %c0_i32_1 = arith.constant 0 : i32
    return %c0_i32, %c0_i32_0 : i32, i32
  }
  func.func @transform_2(%arg0: i32) -> (i32, i32) {
    %c0_i32 = arith.constant 0 : i32
    %c0_i32_0 = arith.constant 0 : i32
    %c0_i32_1 = arith.constant 0 : i32
    return %c0_i32, %c0_i32_0 : i32, i32
  }
  func.func @transform_3(%arg0: i32) -> (i32, i32) {
    %c0_i32 = arith.constant 0 : i32
    %c0_i32_0 = arith.constant 0 : i32
    %c0_i32_1 = arith.constant 0 : i32
    return %c0_i32, %c0_i32_0 : i32, i32
  }
  func.func @transform_4(%arg0: i32) -> (i32, i32) {
    %c0_i32 = arith.constant 0 : i32
    %c0_i32_0 = arith.constant 0 : i32
    %c0_i32_1 = arith.constant 0 : i32
    return %c0_i32, %c0_i32_0 : i32, i32
  }
  func.func @transform_5(%arg0: i32) -> (i32, i32) {
    %c0_i32 = arith.constant 0 : i32
    %c0_i32_0 = arith.constant 0 : i32
    %c0_i32_1 = arith.constant 0 : i32
    return %c0_i32, %c0_i32_0 : i32, i32
  }
  func.func @transform_6(%arg0: i32) -> (i32, i32) {
    %c0_i32 = arith.constant 0 : i32
    %c0_i32_0 = arith.constant 0 : i32
    %c0_i32_1 = arith.constant 0 : i32
    return %c0_i32, %c0_i32_0 : i32, i32
  }
  func.func @transform_7(%arg0: i32) -> (i32, i32) {
    %c0_i32 = arith.constant 0 : i32
    %c0_i32_0 = arith.constant 0 : i32
    %c0_i32_1 = arith.constant 0 : i32
    return %c0_i32, %c0_i32_0 : i32, i32
  }
  func.func @transform_8(%arg0: i32) -> (i32, i32) {
    %c0_i32 = arith.constant 0 : i32
    %c0_i32_0 = arith.constant 0 : i32
    %c0_i32_1 = arith.constant 0 : i32
    return %c0_i32, %c0_i32_0 : i32, i32
  }
  func.func @transform_9(%arg0: i32) -> (i32, i32) {
    %c0_i32 = arith.constant 0 : i32
    %c0_i32_0 = arith.constant 0 : i32
    %c0_i32_1 = arith.constant 0 : i32
    return %c0_i32, %c0_i32_0 : i32, i32
  }
  func.func @transform_10(%arg0: i32) -> (i32, i32) {
    %c0_i32 = arith.constant 0 : i32
    %c0_i32_0 = arith.constant 0 : i32
    return %arg0, %c0_i32 : i32, i32
  }
}

</mosaic_0001>

<llo_original>
// kernel: _forward_impl.1
$region0: #{_forward_impl.1}
  #allocation0 [shape = 'u32[]', space=smem, size = 0x4, offset = 0x4, fixed_abs, tag = 'smem constant byte address 0x4 - core index']
  #allocation1 [shape = 'u32[144,128]{1,0:T(1,128)}', space=vmem, size = 0x12000, scoped, tag = 'internal scratch']
  %s0 = inlined_call_operand.hbm [shape: f32[2,16,32], index: 0, kind: input, shape index: {}]
  %s1 = inlined_call_operand.hbm [shape: bf16[32,128], index: 1, kind: input, shape index: {}]
  %s2 = inlined_call_operand.hbm [shape: bf16[32,128], index: 2, kind: input, shape index: {}]
  %s3 = inlined_call_operand.hbm [shape: bf16[32,128], index: 3, kind: input, shape index: {}]
  %s4 = inlined_call_operand.vmem [shape: f32[1,128], index: 4, kind: input, shape index: {}]
  %s5 = inlined_call_operand.vmem [shape: f32[16,128], index: 5, kind: input, shape index: {}]
  %s6 = inlined_call_operand.hbm [shape: f32[128,128], index: 6, kind: input, shape index: {}]
  %s7 = inlined_call_operand.vmem [shape: f32[1,128], index: 7, kind: input, shape index: {}]
  %s8 = inlined_call_operand.hbm [shape: f32[128,128], index: 8, kind: input, shape index: {}]
  %s9 = inlined_call_operand.vmem [shape: f32[1,128], index: 9, kind: input, shape index: {}]
  %s10 = inlined_call_operand.hbm [shape: f32[2,128], index: 10, kind: output, shape index: {}]
  %s11 = sld [smem:[#allocation0]]
  $region74: #{_forward_impl.1} parent=0
    _
  %s13 = ssub.s32 1, %s11
  %s14 = scalar_select 0, %s13, %s11
  $region1: #{_forward_impl.1} parent=0
    #allocation2 [shape = 'u8[16384]{0}', space=vmem, size = 0x4000, scoped, tag = 'input window, operand 0, single buffered']
    #allocation3 [shape = 's32[1]{0}', space=sflag, size = 0x4, scoped, tag = 'scoped memory for _forward_impl.1']
    #allocation4 [shape = 's32[1]{0}', space=sflag, size = 0x4, scoped, tag = 'scoped memory for _forward_impl.1']
    #allocation5 [shape = 'u8[8192]{0}', space=vmem, size = 0x2000, scoped, tag = 'input window, operand 1, single buffered']
    #allocation6 [shape = 's32[1]{0}', space=sflag, size = 0x4, scoped, tag = 'scoped memory for _forward_impl.1']
    #allocation7 [shape = 'u8[8192]{0}', space=vmem, size = 0x2000, scoped, tag = 'input window, operand 2, single buffered']
    #allocation8 [shape = 'u8[8192]{0}', space=vmem, size = 0x2000, scoped, tag = 'input window, operand 3, single buffered']
    #allocation9 [shape = 's32[1]{0}', space=sflag, size = 0x4, scoped, tag = 'scoped memory for _forward_impl.1']
    #allocation10 [shape = 'u8[65536]{0}', space=vmem, size = 0x10000, scoped, tag = 'input window, operand 6, single buffered']
    #allocation11 [shape = 'u8[65536]{0}', space=vmem, size = 0x10000, scoped, tag = 'input window, operand 8, single buffered']
    #allocation12 [shape = 's32[1]{0}', space=sflag, size = 0x4, scoped, tag = 'scoped memory for _forward_impl.1']
    #allocation13 [shape = 'u8[1024]{0}', space=vmem, size = 0x400, scoped, tag = 'output window, operand 0, single buffered']
    %15 = vsyncpa [#allocation3], 0
    %16 = vsyncpa [#allocation6], 0
    %17 = vsyncpa [#allocation9], 0
    %18 = vsyncpa [#allocation12], 0
    %19 = vsyncpa [#allocation4], 0
    // Predicated region
    $region2: #{_forward_impl.1} parent=1 // pred_check
      _
    $region3: #{_forward_impl.1} parent=1 // pred_check_branch
      %21 = sbr.rel (0) target = $region5
    $region4: #{_forward_impl.1} parent=1 // pred_region
      %s23 = ssub.s32 512, 512
      %24 = vsyncadd [#allocation3], %s23
      %s25 = sshll.u32 [#allocation2], 4
      %s26 = int_to_ptr.vmem [resolvable:$true] %s25
      %31 = dma.hbm_to_vmem [thread:$0]  %s0, 512, %s26, [#allocation3], 128, 128, 8
    $region5: #{_forward_impl.1} parent=1 // pred_fallthru
      _
    // Predicated region
    $region6: #{_forward_impl.1} parent=1 // pred_check
      _
    $region7: #{_forward_impl.1} parent=1 // pred_check_branch
      %33 = sbr.rel (0) target = $region9
    $region8: #{_forward_impl.1} parent=1 // pred_region
      %s35 = ssub.s32 256, 256
      %36 = vsyncadd [#allocation6], %s35
      %s37 = sshll.u32 [#allocation5], 4
      %s38 = int_to_ptr.vmem [resolvable:$true] %s37
      %43 = dma.hbm_to_vmem [thread:$0]  %s1, 256, %s38, [#allocation6], 64, 64, 4
    $region9: #{_forward_impl.1} parent=1 // pred_fallthru
      _
    // Predicated region
    $region10: #{_forward_impl.1} parent=1 // pred_check
      _
    $region11: #{_forward_impl.1} parent=1 // pred_check_branch
      %45 = sbr.rel (0) target = $region13
    $region12: #{_forward_impl.1} parent=1 // pred_region
      %s47 = ssub.s32 256, 256
      %48 = vsyncadd [#allocation6], %s47
      %s49 = sshll.u32 [#allocation7], 4
      %s50 = int_to_ptr.vmem [resolvable:$true] %s49
      %55 = dma.hbm_to_vmem [thread:$0]  %s2, 256, %s50, [#allocation6], 64, 64, 4
    $region13: #{_forward_impl.1} parent=1 // pred_fallthru
      _
    // Predicated region
    $region14: #{_forward_impl.1} parent=1 // pred_check
      _
    $region15: #{_forward_impl.1} parent=1 // pred_check_branch
      %57 = sbr.rel (0) target = $region17
    $region16: #{_forward_impl.1} parent=1 // pred_region
      %s59 = ssub.s32 256, 256
      %60 = vsyncadd [#allocation9], %s59
      %s61 = sshll.u32 [#allocation8], 4
      %s62 = int_to_ptr.vmem [resolvable:$true] %s61
      %67 = dma.hbm_to_vmem [thread:$0]  %s3, 256, %s62, [#allocation9], 64, 64, 4
    $region17: #{_forward_impl.1} parent=1 // pred_fallthru
      _
    // Predicated region
    $region18: #{_forward_impl.1} parent=1 // pred_check
      _
    $region19: #{_forward_impl.1} parent=1 // pred_check_branch
      %69 = sbr.rel (0) target = $region21
    $region20: #{_forward_impl.1} parent=1 // pred_region
      _
    $region21: #{_forward_impl.1} parent=1 // pred_fallthru
      _
    // Predicated region
    $region22: #{_forward_impl.1} parent=1 // pred_check
      _
    $region23: #{_forward_impl.1} parent=1 // pred_check_branch
      %71 = sbr.rel (0) target = $region25
    $region24: #{_forward_impl.1} parent=1 // pred_region
      _
    $region25: #{_forward_impl.1} parent=1 // pred_fallthru
      _
    // Predicated region
    $region26: #{_forward_impl.1} parent=1 // pred_check
      _
    $region27: #{_forward_impl.1} parent=1 // pred_check_branch
      %73 = sbr.rel (0) target = $region29
    $region28: #{_forward_impl.1} parent=1 // pred_region
      %s75 = ssub.s32 2048, 2048
      %76 = vsyncadd [#allocation9], %s75
      %s77 = sshll.u32 [#allocation10], 4
      %s78 = int_to_ptr.vmem [resolvable:$true] %s77
      %83 = dma.hbm_to_vmem [thread:$0]  %s6, 2048, %s78, [#allocation9], 128, 128, 8
    $region29: #{_forward_impl.1} parent=1 // pred_fallthru
      _
    // Predicated region
    $region30: #{_forward_impl.1} parent=1 // pred_check
      _
    $region31: #{_forward_impl.1} parent=1 // pred_check_branch
      %85 = sbr.rel (0) target = $region33
    $region32: #{_forward_impl.1} parent=1 // pred_region
      _
    $region33: #{_forward_impl.1} parent=1 // pred_fallthru
      _
    // Predicated region
    $region34: #{_forward_impl.1} parent=1 // pred_check
      _
    $region35: #{_forward_impl.1} parent=1 // pred_check_branch
      %87 = sbr.rel (0) target = $region37
    $region36: #{_forward_impl.1} parent=1 // pred_region
      %s89 = ssub.s32 2048, 2048
      %90 = vsyncadd [#allocation12], %s89
      %s91 = sshll.u32 [#allocation11], 4
      %s92 = int_to_ptr.vmem [resolvable:$true] %s91
      %97 = dma.hbm_to_vmem [thread:$0]  %s8, 2048, %s92, [#allocation12], 128, 128, 8
    $region37: #{_forward_impl.1} parent=1 // pred_fallthru
      _
    // Predicated region
    $region38: #{_forward_impl.1} parent=1 // pred_check
      _
    $region39: #{_forward_impl.1} parent=1 // pred_check_branch
      %99 = sbr.rel (0) target = $region41
    $region40: #{_forward_impl.1} parent=1 // pred_region
      _
    $region41: #{_forward_impl.1} parent=1 // pred_fallthru
      _
    // Predicated region
    $region42: #{_forward_impl.1} parent=1 // pred_check
      _
    $region43: #{_forward_impl.1} parent=1 // pred_check_branch
      %101 = sbr.rel (0) target = $region45
    $region44: #{_forward_impl.1} parent=1 // pred_region
      %102 = dma.done [#allocation3], 512
    $region45: #{_forward_impl.1} parent=1 // pred_fallthru
      _
    // Predicated region
    $region46: #{_forward_impl.1} parent=1 // pred_check
      _
    $region47: #{_forward_impl.1} parent=1 // pred_check_branch
      %104 = sbr.rel (0) target = $region49
    $region48: #{_forward_impl.1} parent=1 // pred_region
      %105 = dma.done [#allocation6], 256
    $region49: #{_forward_impl.1} parent=1 // pred_fallthru
      _
    // Predicated region
    $region50: #{_forward_impl.1} parent=1 // pred_check
      _
    $region51: #{_forward_impl.1} parent=1 // pred_check_branch
      %107 = sbr.rel (0) target = $region53
    $region52: #{_forward_impl.1} parent=1 // pred_region
      %108 = dma.done [#allocation6], 256
    $region53: #{_forward_impl.1} parent=1 // pred_fallthru
      _
    // Predicated region
    $region54: #{_forward_impl.1} parent=1 // pred_check
      _
    $region55: #{_forward_impl.1} parent=1 // pred_check_branch
      %110 = sbr.rel (0) target = $region57
    $region56: #{_forward_impl.1} parent=1 // pred_region
      %111 = dma.done [#allocation9], 256
    $region57: #{_forward_impl.1} parent=1 // pred_fallthru
      _
    // Predicated region
    $region58: #{_forward_impl.1} parent=1 // pred_check
      _
    $region59: #{_forward_impl.1} parent=1 // pred_check_branch
      %113 = sbr.rel (0) target = $region61
    $region60: #{_forward_impl.1} parent=1 // pred_region
      %114 = dma.done [#allocation9], 2048
    $region61: #{_forward_impl.1} parent=1 // pred_fallthru
      _
    // Predicated region
    $region62: #{_forward_impl.1} parent=1 // pred_check
      _
    $region63: #{_forward_impl.1} parent=1 // pred_check_branch
      %116 = sbr.rel (0) target = $region65
    $region64: #{_forward_impl.1} parent=1 // pred_region
      %117 = dma.done [#allocation12], 2048
    $region65: #{_forward_impl.1} parent=1 // pred_fallthru
      _
    %v119 = vld [vmem:[#allocation2] sm:$0xff]
    %v120 = vld [vmem:[#allocation2 + $0x8] sm:$0xff]
    %v121 = vld [vmem:[#allocation2 + $0x10] sm:$0xff]
    %v122 = vld [vmem:[#allocation2 + $0x18] sm:$0xff]
    %v123 = vpack.c.bf16 %v120, %v119
    %v124 = vpack.c.bf16 %v122, %v121
    %v125 = vld [vmem:[#allocation5] sm:$0xf]
    %v126 = vld [vmem:[#allocation5 + $0x4] sm:$0xf]
    %v127 = vld [vmem:[#allocation5 + $0x8] sm:$0xf]
    %v128 = vld [vmem:[#allocation5 + $0xc] sm:$0xf]
    %v129 = vrot.slane %v119, 1
    %v130 = vrot.slane %v120, 1
    %v131 = vrot.slane %v121, 1
    %v132 = vrot.slane %v122, 1
    %v133 = vlaneseq
    %v134 = vshrl.u32 %v133, 7
    %vm135 = vcmp.lt.s32.totalorder %v134, 7
    %v136 = vsel %vm135, %v131, %v132
    %v137 = vsel %vm135, %v130, %v131
    %v138 = vsel %vm135, %v129, %v130
    %v139 = vsel %vm135, %v132, %v129
    %v140 = vpack.c.bf16 %v137, %v138
    %v141 = vpack.c.bf16 %v139, %v136
    %v142 = vld [vmem:[#allocation7] sm:$0xf]
    %v143 = vld [vmem:[#allocation7 + $0x4] sm:$0xf]
    %v144 = vld [vmem:[#allocation7 + $0x8] sm:$0xf]
    %v145 = vld [vmem:[#allocation7 + $0xc] sm:$0xf]
    %v150 = vunpack.c.l.b16 %v142
    %v151 = vunpack.c.l.b16 %v143
    %v152 = vunpack.c.l.b16 %v144
    %v153 = vunpack.c.l.b16 %v145
    %v154 = vpack.c.b16 %v151, %v150
    %v155 = vpack.c.b16 %v153, %v152
    %vm158 = vcmask 261120
    %v160 = vsel %vm158, %v140, 0
    %v163 = vsel %vm158, %v141, 0
    %165 = vmatprep.subr.bf16.mxu0 0
    %166 = vmatpush1.bf16.msra.mxu0 %v154
    %167 = vmatprep.subr.bf16.mxu0 0
    %168 = vmatpush1.bf16.msra.mxu0 %v155
    %169 = vmatprep.subr.bf16.mxu0 0
    %170 = vmatpush1.bf16.msra.mxu0 0
    %171 = vmatprep.subr.bf16.mxu0 0
    %172 = vmatpush1.bf16.msra.mxu0 0
    %173 = vmatprep.subr.bf16.mxu0 0
    %174 = vmatpush1.bf16.msra.mxu0 0
    %175 = vmatprep.subr.bf16.mxu0 0
    %176 = vmatpush1.bf16.msra.mxu0 0
    %177 = vmatprep.subr.bf16.mxu0 0
    %178 = vmatpush1.bf16.msra.mxu0 0
    %179 = vmatprep.subr.bf16.mxu0 0
    %180 = vmatpush1.bf16.msra.mxu0 0
    %181 = vmatprep.subr.bf16.mxu0 0
    %182 = vmatpush1.bf16.msra.mxu0 0
    %183 = vmatprep.subr.bf16.mxu0 0
    %184 = vmatpush1.bf16.msra.mxu0 0
    %185 = vmatprep.subr.bf16.mxu0 0
    %186 = vmatpush1.bf16.msra.mxu0 0
    %187 = vmatprep.subr.bf16.mxu0 0
    %188 = vmatpush1.bf16.msra.mxu0 0
    %189 = vmatprep.subr.bf16.mxu0 0
    %190 = vmatpush1.bf16.msra.mxu0 0
    %191 = vmatprep.subr.bf16.mxu0 0
    %192 = vmatpush1.bf16.msra.mxu0 0
    %193 = vmatprep.subr.bf16.mxu0 0
    %194 = vmatpush1.bf16.msra.mxu0 0
    %195 = vmatprep.subr.bf16.mxu0 0
    %196 = vmatpush1.bf16.msra.mxu0 0
    %197 = vmatprep.mubr.bf16.mxu0 0
    %198 = vmatmul.mubr.bf16.gmra.mrb[0].mxu0 %v160
    %v199 = vpop.f32.mrb[0].mxu0
    %v200 = vadd.f32 0.0, %v199
    %v201 = vpop.f32.mrb[0].mxu0
    %v202 = vpop.f32.mrb[0].mxu0
    %v203 = vadd.f32 0.0, %v202
    %v204 = vpop.f32.mrb[0].mxu0
    %205 = vmatprep.mubr.bf16.mxu0 0
    %206 = vmatmul.mubr.bf16.gmra.mrb[0].mxu0 %v163
    %v207 = vpop.f32.mrb[0].mxu0
    %v208 = vadd.f32 0.0, %v207
    %v209 = vpop.f32.mrb[0].mxu0
    %v210 = vpop.f32.mrb[0].mxu0
    %v211 = vadd.f32 0.0, %v210
    %v212 = vpop.f32.mrb[0].mxu0
    %213 = vdwg.mxu0
    %v218 = vunpack.c.l.b16 %v125
    %v219 = vunpack.c.l.b16 %v126
    %v220 = vunpack.c.l.b16 %v127
    %v221 = vunpack.c.l.b16 %v128
    %v222 = vpack.c.b16 %v219, %v218
    %v223 = vpack.c.b16 %v221, %v220
    %v227 = vsel %vm158, %v123, 0
    %v230 = vsel %vm158, %v124, 0
    %232 = vmatprep.subr.bf16.mxu0 0
    %233 = vmatpush1.bf16.msra.mxu0 %v222
    %234 = vmatprep.subr.bf16.mxu0 0
    %235 = vmatpush1.bf16.msra.mxu0 %v223
    %236 = vmatprep.subr.bf16.mxu0 0
    %237 = vmatpush1.bf16.msra.mxu0 0
    %238 = vmatprep.subr.bf16.mxu0 0
    %239 = vmatpush1.bf16.msra.mxu0 0
    %240 = vmatprep.subr.bf16.mxu0 0
    %241 = vmatpush1.bf16.msra.mxu0 0
    %242 = vmatprep.subr.bf16.mxu0 0
    %243 = vmatpush1.bf16.msra.mxu0 0
    %244 = vmatprep.subr.bf16.mxu0 0
    %245 = vmatpush1.bf16.msra.mxu0 0
    %246 = vmatprep.subr.bf16.mxu0 0
    %247 = vmatpush1.bf16.msra.mxu0 0
    %248 = vmatprep.subr.bf16.mxu0 0
    %249 = vmatpush1.bf16.msra.mxu0 0
    %250 = vmatprep.subr.bf16.mxu0 0
    %251 = vmatpush1.bf16.msra.mxu0 0
    %252 = vmatprep.subr.bf16.mxu0 0
    %253 = vmatpush1.bf16.msra.mxu0 0
    %254 = vmatprep.subr.bf16.mxu0 0
    %255 = vmatpush1.bf16.msra.mxu0 0
    %256 = vmatprep.subr.bf16.mxu0 0
    %257 = vmatpush1.bf16.msra.mxu0 0
    %258 = vmatprep.subr.bf16.mxu0 0
    %259 = vmatpush1.bf16.msra.mxu0 0
    %260 = vmatprep.subr.bf16.mxu0 0
    %261 = vmatpush1.bf16.msra.mxu0 0
    %262 = vmatprep.subr.bf16.mxu0 0
    %263 = vmatpush1.bf16.msra.mxu0 0
    %264 = vmatprep.mubr.bf16.mxu0 0
    %265 = vmatmul.mubr.bf16.gmra.mrb[0].mxu0 %v227
    %v266 = vpop.f32.mrb[0].mxu0
    %v267 = vadd.f32 %v200, %v266
    %v268 = vpop.f32.mrb[0].mxu0
    %v269 = vpop.f32.mrb[0].mxu0
    %v270 = vadd.f32 %v203, %v269
    %v271 = vpop.f32.mrb[0].mxu0
    %272 = vmatprep.mubr.bf16.mxu0 0
    %273 = vmatmul.mubr.bf16.gmra.mrb[0].mxu0 %v230
    %v274 = vpop.f32.mrb[0].mxu0
    %v275 = vadd.f32 %v208, %v274
    %v276 = vpop.f32.mrb[0].mxu0
    %v277 = vpop.f32.mrb[0].mxu0
    %v278 = vadd.f32 %v211, %v277
    %v279 = vpop.f32.mrb[0].mxu0
    %280 = vdwg.mxu0
    %v281 = vrot.slane %v119, 2
    %v282 = vrot.slane %v120, 2
    %v283 = vrot.slane %v121, 2
    %v284 = vrot.slane %v122, 2
    %vm285 = vcmp.lt.s32.totalorder %v134, 6
    %v286 = vsel %vm285, %v283, %v284
    %v287 = vsel %vm285, %v282, %v283
    %v288 = vsel %vm285, %v281, %v282
    %v289 = vsel %vm285, %v284, %v281
    %v290 = vpack.c.bf16 %v287, %v288
    %v291 = vpack.c.bf16 %v289, %v286
    %v292 = vld [vmem:[#allocation8] sm:$0xf]
    %v293 = vld [vmem:[#allocation8 + $0x4] sm:$0xf]
    %v294 = vld [vmem:[#allocation8 + $0x8] sm:$0xf]
    %v295 = vld [vmem:[#allocation8 + $0xc] sm:$0xf]
    %v300 = vunpack.c.l.b16 %v292
    %v301 = vunpack.c.l.b16 %v293
    %v302 = vunpack.c.l.b16 %v294
    %v303 = vunpack.c.l.b16 %v295
    %v304 = vpack.c.b16 %v301, %v300
    %v305 = vpack.c.b16 %v303, %v302
    %v309 = vsel %vm158, %v290, 0
    %v312 = vsel %vm158, %v291, 0
    %314 = vmatprep.subr.bf16.mxu0 0
    %315 = vmatpush1.bf16.msra.mxu0 %v304
    %316 = vmatprep.subr.bf16.mxu0 0
    %317 = vmatpush1.bf16.msra.mxu0 %v305
    %318 = vmatprep.subr.bf16.mxu0 0
    %319 = vmatpush1.bf16.msra.mxu0 0
    %320 = vmatprep.subr.bf16.mxu0 0
    %321 = vmatpush1.bf16.msra.mxu0 0
    %322 = vmatprep.subr.bf16.mxu0 0
    %323 = vmatpush1.bf16.msra.mxu0 0
    %324 = vmatprep.subr.bf16.mxu0 0
    %325 = vmatpush1.bf16.msra.mxu0 0
    %326 = vmatprep.subr.bf16.mxu0 0
    %327 = vmatpush1.bf16.msra.mxu0 0
    %328 = vmatprep.subr.bf16.mxu0 0
    %329 = vmatpush1.bf16.msra.mxu0 0
    %330 = vmatprep.subr.bf16.mxu0 0
    %331 = vmatpush1.bf16.msra.mxu0 0
    %332 = vmatprep.subr.bf16.mxu0 0
    %333 = vmatpush1.bf16.msra.mxu0 0
    %334 = vmatprep.subr.bf16.mxu0 0
    %335 = vmatpush1.bf16.msra.mxu0 0
    %336 = vmatprep.subr.bf16.mxu0 0
    %337 = vmatpush1.bf16.msra.mxu0 0
    %338 = vmatprep.subr.bf16.mxu0 0
    %339 = vmatpush1.bf16.msra.mxu0 0
    %340 = vmatprep.subr.bf16.mxu0 0
    %341 = vmatpush1.bf16.msra.mxu0 0
    %342 = vmatprep.subr.bf16.mxu0 0
    %343 = vmatpush1.bf16.msra.mxu0 0
    %344 = vmatprep.subr.bf16.mxu0 0
    %345 = vmatpush1.bf16.msra.mxu0 0
    %346 = vmatprep.mubr.bf16.mxu0 0
    %347 = vmatmul.mubr.bf16.gmra.mrb[0].mxu0 %v309
    %v348 = vpop.f32.mrb[0].mxu0
    %v349 = vadd.f32 0.0, %v348
    %v350 = vpop.f32.mrb[0].mxu0
    %v351 = vpop.f32.mrb[0].mxu0
    %v352 = vadd.f32 0.0, %v351
    %v353 = vpop.f32.mrb[0].mxu0
    %354 = vmatprep.mubr.bf16.mxu0 0
    %355 = vmatmul.mubr.bf16.gmra.mrb[0].mxu0 %v312
    %v356 = vpop.f32.mrb[0].mxu0
    %v357 = vadd.f32 0.0, %v356
    %v358 = vpop.f32.mrb[0].mxu0
    %v359 = vpop.f32.mrb[0].mxu0
    %v360 = vadd.f32 0.0, %v359
    %v361 = vpop.f32.mrb[0].mxu0
    %362 = vdwg.mxu0
    %v363 = vadd.f32 %v267, %v349
    %v364 = vadd.f32 %v270, %v352
    %v365 = vadd.f32 %v275, %v357
    %v366 = vadd.f32 %v278, %v360
    %v367 = vld [vmem:[%s4] sm:$0x1]
    %v369 = vlaneseq
    %v370 = vshrl.u32 %v369, 7
    %v371 = vsub.s32 0, %v370
    %v372 = vrot.slane %v367, %v371
    %v374 = vadd.f32 %v363, %v372
    %v375 = vadd.f32 %v364, %v372
    %v376 = vadd.f32 %v365, %v372
    %v377 = vadd.f32 %v366, %v372
    %v378 = vmax.f32 %v374, 0.0
    %v379 = vmax.f32 %v375, 0.0
    %v380 = vmax.f32 %v376, 0.0
    %v381 = vmax.f32 %v377, 0.0
    %v382 = vld [vmem:[%s5] sm:$0xff]
    %v383 = vld [vmem:[%s5 + $0x8] sm:$0xff]
    %v384 = vmul.f32 %v378, %v382
    %v385 = vmul.f32 %v379, %v383
    %v386 = vmul.f32 %v380, %v382
    %v387 = vmul.f32 %v381, %v383
    %v388 = vmax.f32 %v384, %v385
    %v389 = vrot.slane %v388, 4
    %v390 = vmax.f32 %v388, %v389
    %v391 = vrot.slane %v390, 2
    %v392 = vmax.f32 %v390, %v391
    %v393 = vrot.slane %v392, 1
    %v394 = vmax.f32 %v392, %v393
    %v395 = vmax.f32 %v386, %v387
    %v396 = vrot.slane %v395, 4
    %v397 = vmax.f32 %v395, %v396
    %v398 = vrot.slane %v397, 2
    %v399 = vmax.f32 %v397, %v398
    %v400 = vrot.slane %v399, 1
    %v401 = vmax.f32 %v399, %v400
    %v402 = vld [vmem:[#allocation10] sm:$0xff]
    %v403 = vld [vmem:[#allocation10 + $0x8] sm:$0xff]
    %v404 = vld [vmem:[#allocation10 + $0x10] sm:$0xff]
    %v405 = vld [vmem:[#allocation10 + $0x18] sm:$0xff]
    %v406 = vld [vmem:[#allocation10 + $0x20] sm:$0xff]
    %v407 = vld [vmem:[#allocation10 + $0x28] sm:$0xff]
    %v408 = vld [vmem:[#allocation10 + $0x30] sm:$0xff]
    %v409 = vld [vmem:[#allocation10 + $0x38] sm:$0xff]
    %v410 = vld [vmem:[#allocation10 + $0x40] sm:$0xff]
    %v411 = vld [vmem:[#allocation10 + $0x48] sm:$0xff]
    %v412 = vld [vmem:[#allocation10 + $0x50] sm:$0xff]
    %v413 = vld [vmem:[#allocation10 + $0x58] sm:$0xff]
    %v414 = vld [vmem:[#allocation10 + $0x60] sm:$0xff]
    %v415 = vld [vmem:[#allocation10 + $0x68] sm:$0xff]
    %v416 = vld [vmem:[#allocation10 + $0x70] sm:$0xff]
    %v417 = vld [vmem:[#allocation10 + $0x78] sm:$0xff]
    %v418 = vld [vmem:[%s7] sm:$0x1]
    %v420 = vlaneseq
    %v421 = vshrl.u32 %v420, 7
    %v422 = vsub.s32 0, %v421
    %v423 = vrot.slane %v418, %v422
    %vm427 = vcmask 1041409
    %v428 = vsel %vm427, %v401, %v394
    %430 = vmatprep.subr.mxu0 0.0
    %431 = vmatpush1.msra.mxu0 %v402
    %432 = vmatprep.subr.mxu0 0.0
    %433 = vmatpush1.msra.mxu0 %v403
    %434 = vmatprep.subr.mxu0 0.0
    %435 = vmatpush1.msra.mxu0 %v404
    %436 = vmatprep.subr.mxu0 0.0
    %437 = vmatpush1.msra.mxu0 %v405
    %438 = vmatprep.subr.mxu0 0.0
    %439 = vmatpush1.msra.mxu0 %v406
    %440 = vmatprep.subr.mxu0 0.0
    %441 = vmatpush1.msra.mxu0 %v407
    %442 = vmatprep.subr.mxu0 0.0
    %443 = vmatpush1.msra.mxu0 %v408
    %444 = vmatprep.subr.mxu0 0.0
    %445 = vmatpush1.msra.mxu0 %v409
    %446 = vmatprep.subr.mxu0 0.0
    %447 = vmatpush1.msra.mxu0 %v410
    %448 = vmatprep.subr.mxu0 0.0
    %449 = vmatpush1.msra.mxu0 %v411
    %450 = vmatprep.subr.mxu0 0.0
    %451 = vmatpush1.msra.mxu0 %v412
    %452 = vmatprep.subr.mxu0 0.0
    %453 = vmatpush1.msra.mxu0 %v413
    %454 = vmatprep.subr.mxu0 0.0
    %455 = vmatpush1.msra.mxu0 %v414
    %456 = vmatprep.subr.mxu0 0.0
    %457 = vmatpush1.msra.mxu0 %v415
    %458 = vmatprep.subr.mxu0 0.0
    %459 = vmatpush1.msra.mxu0 %v416
    %460 = vmatprep.subr.mxu0 0.0
    %461 = vmatpush1.msra.mxu0 %v417
    %462 = vmatprep.subr.mxu0 0.0
    %463 = vmatpush1.msra.mxu0 0.0
    %464 = vmatprep.subr.mxu0 0.0
    %465 = vmatpush1.msra.mxu0 0.0
    %466 = vmatprep.subr.mxu0 0.0
    %467 = vmatpush1.msra.mxu0 0.0
    %468 = vmatprep.subr.mxu0 0.0
    %469 = vmatpush1.msra.mxu0 0.0
    %470 = vmatprep.subr.mxu0 0.0
    %471 = vmatpush1.msra.mxu0 0.0
    %472 = vmatprep.subr.mxu0 0.0
    %473 = vmatpush1.msra.mxu0 0.0
    %474 = vmatprep.subr.mxu0 0.0
    %475 = vmatpush1.msra.mxu0 0.0
    %476 = vmatprep.subr.mxu0 0.0
    %477 = vmatpush1.msra.mxu0 0.0
    %478 = vmatprep.subr.mxu0 0.0
    %479 = vmatpush1.msra.mxu0 0.0
    %480 = vmatprep.subr.mxu0 0.0
    %481 = vmatpush1.msra.mxu0 0.0
    %482 = vmatprep.subr.mxu0 0.0
    %483 = vmatpush1.msra.mxu0 0.0
    %484 = vmatprep.subr.mxu0 0.0
    %485 = vmatpush1.msra.mxu0 0.0
    %486 = vmatprep.subr.mxu0 0.0
    %487 = vmatpush1.msra.mxu0 0.0
    %488 = vmatprep.subr.mxu0 0.0
    %489 = vmatpush1.msra.mxu0 0.0
    %490 = vmatprep.subr.mxu0 0.0
    %491 = vmatpush1.msra.mxu0 0.0
    %492 = vmatprep.subr.mxu0 0.0
    %493 = vmatpush1.msra.mxu0 0.0
    %494 = vmatprep.mubr.f32.mxu0 0.0
    %495 = vmatmul.mubr.f32.gmra.mrb[0].mxu0 %v428
    %v496 = vpop.f32.mrb[0].mxu0
    %v497 = vadd.f32 %v423, %v496
    %v498 = vpop.f32.mrb[0].mxu0
    %499 = vdwg.mxu0
    %v500 = vxor.u32 %v497, 2147483648
    %v501 = vmul.f32 %v500, 1.442695
    %v502 = vpow.pop %v501
    %v503 = vadd.f32 %v502, 1.0
    %v504 = vrcp.pop %v503
    %v505 = vmul.f32 1.0, %v504
    %v506 = vmax.f32 %v497, 0.0
    %v507 = vmul.f32 %v505, %v506
    %v508 = vsub.f32 1.0, %v505
    %v509 = vmul.f32 %v508, %v428
    %v510 = vadd.f32 %v507, %v509
    %v511 = vld [vmem:[#allocation11] sm:$0xff]
    %v512 = vld [vmem:[#allocation11 + $0x8] sm:$0xff]
    %v513 = vld [vmem:[#allocation11 + $0x10] sm:$0xff]
    %v514 = vld [vmem:[#allocation11 + $0x18] sm:$0xff]
    %v515 = vld [vmem:[#allocation11 + $0x20] sm:$0xff]
    %v516 = vld [vmem:[#allocation11 + $0x28] sm:$0xff]
    %v517 = vld [vmem:[#allocation11 + $0x30] sm:$0xff]
    %v518 = vld [vmem:[#allocation11 + $0x38] sm:$0xff]
    %v519 = vld [vmem:[#allocation11 + $0x40] sm:$0xff]
    %v520 = vld [vmem:[#allocation11 + $0x48] sm:$0xff]
    %v521 = vld [vmem:[#allocation11 + $0x50] sm:$0xff]
    %v522 = vld [vmem:[#allocation11 + $0x58] sm:$0xff]
    %v523 = vld [vmem:[#allocation11 + $0x60] sm:$0xff]
    %v524 = vld [vmem:[#allocation11 + $0x68] sm:$0xff]
    %v525 = vld [vmem:[#allocation11 + $0x70] sm:$0xff]
    %v526 = vld [vmem:[#allocation11 + $0x78] sm:$0xff]
    %v527 = vld [vmem:[%s9] sm:$0x1]
    %v529 = vlaneseq
    %v530 = vshrl.u32 %v529, 7
    %v531 = vsub.s32 0, %v530
    %v532 = vrot.slane %v527, %v531
    %534 = vmatprep.subr.mxu0 0.0
    %535 = vmatpush1.msra.mxu0 %v511
    %536 = vmatprep.subr.mxu0 0.0
    %537 = vmatpush1.msra.mxu0 %v512
    %538 = vmatprep.subr.mxu0 0.0
    %539 = vmatpush1.msra.mxu0 %v513
    %540 = vmatprep.subr.mxu0 0.0
    %541 = vmatpush1.msra.mxu0 %v514
    %542 = vmatprep.subr.mxu0 0.0
    %543 = vmatpush1.msra.mxu0 %v515
    %544 = vmatprep.subr.mxu0 0.0
    %545 = vmatpush1.msra.mxu0 %v516
    %546 = vmatprep.subr.mxu0 0.0
    %547 = vmatpush1.msra.mxu0 %v517
    %548 = vmatprep.subr.mxu0 0.0
    %549 = vmatpush1.msra.mxu0 %v518
    %550 = vmatprep.subr.mxu0 0.0
    %551 = vmatpush1.msra.mxu0 %v519
    %552 = vmatprep.subr.mxu0 0.0
    %553 = vmatpush1.msra.mxu0 %v520
    %554 = vmatprep.subr.mxu0 0.0
    %555 = vmatpush1.msra.mxu0 %v521
    %556 = vmatprep.subr.mxu0 0.0
    %557 = vmatpush1.msra.mxu0 %v522
    %558 = vmatprep.subr.mxu0 0.0
    %559 = vmatpush1.msra.mxu0 %v523
    %560 = vmatprep.subr.mxu0 0.0
    %561 = vmatpush1.msra.mxu0 %v524
    %562 = vmatprep.subr.mxu0 0.0
    %563 = vmatpush1.msra.mxu0 %v525
    %564 = vmatprep.subr.mxu0 0.0
    %565 = vmatpush1.msra.mxu0 %v526
    %566 = vmatprep.subr.mxu0 0.0
    %567 = vmatpush1.msra.mxu0 0.0
    %568 = vmatprep.subr.mxu0 0.0
    %569 = vmatpush1.msra.mxu0 0.0
    %570 = vmatprep.subr.mxu0 0.0
    %571 = vmatpush1.msra.mxu0 0.0
    %572 = vmatprep.subr.mxu0 0.0
    %573 = vmatpush1.msra.mxu0 0.0
    %574 = vmatprep.subr.mxu0 0.0
    %575 = vmatpush1.msra.mxu0 0.0
    %576 = vmatprep.subr.mxu0 0.0
    %577 = vmatpush1.msra.mxu0 0.0
    %578 = vmatprep.subr.mxu0 0.0
    %579 = vmatpush1.msra.mxu0 0.0
    %580 = vmatprep.subr.mxu0 0.0
    %581 = vmatpush1.msra.mxu0 0.0
    %582 = vmatprep.subr.mxu0 0.0
    %583 = vmatpush1.msra.mxu0 0.0
    %584 = vmatprep.subr.mxu0 0.0
    %585 = vmatpush1.msra.mxu0 0.0
    %586 = vmatprep.subr.mxu0 0.0
    %587 = vmatpush1.msra.mxu0 0.0
    %588 = vmatprep.subr.mxu0 0.0
    %589 = vmatpush1.msra.mxu0 0.0
    %590 = vmatprep.subr.mxu0 0.0
    %591 = vmatpush1.msra.mxu0 0.0
    %592 = vmatprep.subr.mxu0 0.0
    %593 = vmatpush1.msra.mxu0 0.0
    %594 = vmatprep.subr.mxu0 0.0
    %595 = vmatpush1.msra.mxu0 0.0
    %596 = vmatprep.subr.mxu0 0.0
    %597 = vmatpush1.msra.mxu0 0.0
    %598 = vmatprep.mubr.f32.mxu0 0.0
    %599 = vmatmul.mubr.f32.gmra.mrb[0].mxu0 %v510
    %v600 = vpop.f32.mrb[0].mxu0
    %v601 = vadd.f32 %v532, %v600
    %v602 = vpop.f32.mrb[0].mxu0
    %603 = vdwg.mxu0
    %604 = vst [vmem:[#allocation13] sm:$0x3] %v601
    // Predicated region
    $region66: #{_forward_impl.1} parent=1 // pred_check
      _
    $region67: #{_forward_impl.1} parent=1 // pred_check_branch
      %606 = sbr.rel (0) target = $region69
    $region68: #{_forward_impl.1} parent=1 // pred_region
      %s608 = ssub.s32 32, 32
      %609 = vsyncadd [#allocation4], %s608
      %s611 = sshll.u32 [#allocation13], 4
      %s612 = int_to_ptr.vmem [resolvable:$true] %s611
      %614 = dma.vmem_to_hbm [thread:$0]  %s612, 32, %s10, [#allocation4]
    $region69: #{_forward_impl.1} parent=1 // pred_fallthru
      _
    // Predicated region
    $region70: #{_forward_impl.1} parent=1 // pred_check
      _
    $region71: #{_forward_impl.1} parent=1 // pred_check_branch
      %616 = sbr.rel (0) target = $region73
    $region72: #{_forward_impl.1} parent=1 // pred_region
      %617 = dma.done [#allocation4], 32
    $region73: #{_forward_impl.1} parent=1 // pred_fallthru
      _
    %618 = vsyncpa [#allocation3], 1
    %619 = vsyncpa [#allocation6], 1
    %620 = vsyncpa [#allocation9], 1
    %621 = vsyncpa [#allocation12], 1
    %622 = vsyncpa [#allocation4], 1

// kernel: _forward_impl.1
$region0: #{_forward_impl.1}
  #allocation0 [shape = 'u32[]', space=smem, size = 0x4, offset = 0x4, fixed_abs, tag = 'smem constant byte address 0x4 - core index']
  #allocation1 [shape = 'u32[144,128]{1,0:T(1,128)}', space=vmem, size = 0x12000, scoped, tag = 'internal scratch']
  %s0 = inlined_call_operand.hbm [shape: f32[2,16,32], index: 0, kind: input, shape index: {}]
  %s1 = inlined_call_operand.hbm [shape: bf16[32,128], index: 1, kind: input, shape index: {}]
  %s2 = inlined_call_operand.hbm [shape: bf16[32,128], index: 2, kind: input, shape index: {}]
  %s3 = inlined_call_operand.hbm [shape: bf16[32,128], index: 3, kind: input, shape index: {}]
  %s4 = inlined_call_operand.vmem [shape: f32[1,128], index: 4, kind: input, shape index: {}]
  %s5 = inlined_call_operand.vmem [shape: f32[16,128], index: 5, kind: input, shape index: {}]
  %s6 = inlined_call_operand.hbm [shape: f32[128,128], index: 6, kind: input, shape index: {}]
  %s7 = inlined_call_operand.vmem [shape: f32[1,128], index: 7, kind: input, shape index: {}]
  %s8 = inlined_call_operand.hbm [shape: f32[128,128], index: 8, kind: input, shape index: {}]
  %s9 = inlined_call_operand.vmem [shape: f32[1,128], index: 9, kind: input, shape index: {}]
  %s10 = inlined_call_operand.hbm [shape: f32[2,128], index: 10, kind: output, shape index: {}]
  %s11 = sld [smem:[#allocation0]]
  $region74: #{_forward_impl.1} parent=0
    _
  %s13 = ssub.s32 1, %s11
  %s14 = scalar_select 0, %s13, %s11
  $region1: #{_forward_impl.1} parent=0
    #allocation2 [shape = 'u8[16384]{0}', space=vmem, size = 0x4000, scoped, tag = 'input window, operand 0, single buffered']
    #allocation3 [shape = 's32[1]{0}', space=sflag, size = 0x4, scoped, tag = 'scoped memory for _forward_impl.1']
    #allocation4 [shape = 's32[1]{0}', space=sflag, size = 0x4, scoped, tag = 'scoped memory for _forward_impl.1']
    #allocation5 [shape = 'u8[8192]{0}', space=vmem, size = 0x2000, scoped, tag = 'input window, operand 1, single buffered']
    #allocation6 [shape = 's32[1]{0}', space=sflag, size = 0x4, scoped, tag = 'scoped memory for _forward_impl.1']
    #allocation7 [shape = 'u8[8192]{0}', space=vmem, size = 0x2000, scoped, tag = 'input window, operand 2, single buffered']
    #allocation8 [shape = 'u8[8192]{0}', space=vmem, size = 0x2000, scoped, tag = 'input window, operand 3, single buffered']
    #allocation9 [shape = 's32[1]{0}', space=sflag, size = 0x4, scoped, tag = 'scoped memory for _forward_impl.1']
    #allocation10 [shape = 'u8[65536]{0}', space=vmem, size = 0x10000, scoped, tag = 'input window, operand 6, single buffered']
    #allocation11 [shape = 'u8[65536]{0}', space=vmem, size = 0x10000, scoped, tag = 'input window, operand 8, single buffered']
    #allocation12 [shape = 's32[1]{0}', space=sflag, size = 0x4, scoped, tag = 'scoped memory for _forward_impl.1']
    #allocation13 [shape = 'u8[1024]{0}', space=vmem, size = 0x400, scoped, tag = 'output window, operand 0, single buffered']
    %15 = vsyncpa [#allocation3], 0
    %16 = vsyncpa [#allocation6], 0
    %17 = vsyncpa [#allocation9], 0
    %18 = vsyncpa [#allocation12], 0
    %19 = vsyncpa [#allocation4], 0
    // Predicated region
    $region2: #{_forward_impl.1} parent=1 // pred_check
      _
    $region3: #{_forward_impl.1} parent=1 // pred_check_branch
      %21 = sbr.rel (0) target = $region5
    $region4: #{_forward_impl.1} parent=1 // pred_region
      %s23 = ssub.s32 512, 512
      %24 = vsyncadd [#allocation3], %s23
      %s25 = sshll.u32 [#allocation2], 4
      %s26 = int_to_ptr.vmem [resolvable:$true] %s25
      %31 = dma.hbm_to_vmem [thread:$0]  %s0, 512, %s26, [#allocation3], 128, 128, 8
    $region5: #{_forward_impl.1} parent=1 // pred_fallthru
      _
    // Predicated region
    $region6: #{_forward_impl.1} parent=1 // pred_check
      _
    $region7: #{_forward_impl.1} parent=1 // pred_check_branch
      %33 = sbr.rel (0) target = $region9
    $region8: #{_forward_impl.1} parent=1 // pred_region
      %s35 = ssub.s32 256, 256
      %36 = vsyncadd [#allocation6], %s35
      %s37 = sshll.u32 [#allocation5], 4
      %s38 = int_to_ptr.vmem [resolvable:$true] %s37
      %43 = dma.hbm_to_vmem [thread:$0]  %s1, 256, %s38, [#allocation6], 64, 64, 4
    $region9: #{_forward_impl.1} parent=1 // pred_fallthru
      _
    // Predicated region
    $region10: #{_forward_impl.1} parent=1 // pred_check
      _
    $region11: #{_forward_impl.1} parent=1 // pred_check_branch
      %45 = sbr.rel (0) target = $region13
    $region12: #{_forward_impl.1} parent=1 // pred_region
      %s47 = ssub.s32 256, 256
      %48 = vsyncadd [#allocation6], %s47
      %s49 = sshll.u32 [#allocation7], 4
      %s50 = int_to_ptr.vmem [resolvable:$true] %s49
      %55 = dma.hbm_to_vmem [thread:$0]  %s2, 256, %s50, [#allocation6], 64, 64, 4
    $region13: #{_forward_impl.1} parent=1 // pred_fallthru
      _
    // Predicated region
    $region14: #{_forward_impl.1} parent=1 // pred_check
      _
    $region15: #{_forward_impl.1} parent=1 // pred_check_branch
      %57 = sbr.rel (0) target = $region17
    $region16: #{_forward_impl.1} parent=1 // pred_region
      %s59 = ssub.s32 256, 256
      %60 = vsyncadd [#allocation9], %s59
      %s61 = sshll.u32 [#allocation8], 4
      %s62 = int_to_ptr.vmem [resolvable:$true] %s61
      %67 = dma.hbm_to_vmem [thread:$0]  %s3, 256, %s62, [#allocation9], 64, 64, 4
    $region17: #{_forward_impl.1} parent=1 // pred_fallthru
      _
    // Predicated region
    $region18: #{_forward_impl.1} parent=1 // pred_check
      _
    $region19: #{_forward_impl.1} parent=1 // pred_check_branch
      %69 = sbr.rel (0) target = $region21
    $region20: #{_forward_impl.1} parent=1 // pred_region
      _
    $region21: #{_forward_impl.1} parent=1 // pred_fallthru
      _
    // Predicated region
    $region22: #{_forward_impl.1} parent=1 // pred_check
      _
    $region23: #{_forward_impl.1} parent=1 // pred_check_branch
      %71 = sbr.rel (0) target = $region25
    $region24: #{_forward_impl.1} parent=1 // pred_region
      _
    $region25: #{_forward_impl.1} parent=1 // pred_fallthru
      _
    // Predicated region
    $region26: #{_forward_impl.1} parent=1 // pred_check
      _
    $region27: #{_forward_impl.1} parent=1 // pred_check_branch
      %73 = sbr.rel (0) target = $region29
    $region28: #{_forward_impl.1} parent=1 // pred_region
      %s75 = ssub.s32 2048, 2048
      %76 = vsyncadd [#allocation9], %s75
      %s77 = sshll.u32 [#allocation10], 4
      %s78 = int_to_ptr.vmem [resolvable:$true] %s77
      %83 = dma.hbm_to_vmem [thread:$0]  %s6, 2048, %s78, [#allocation9], 128, 128, 8
    $region29: #{_forward_impl.1} parent=1 // pred_fallthru
      _
    // Predicated region
    $region30: #{_forward_impl.1} parent=1 // pred_check
      _
    $region31: #{_forward_impl.1} parent=1 // pred_check_branch
      %85 = sbr.rel (0) target = $region33
    $region32: #{_forward_impl.1} parent=1 // pred_region
      _
    $region33: #{_forward_impl.1} parent=1 // pred_fallthru
      _
    // Predicated region
    $region34: #{_forward_impl.1} parent=1 // pred_check
      _
    $region35: #{_forward_impl.1} parent=1 // pred_check_branch
      %87 = sbr.rel (0) target = $region37
    $region36: #{_forward_impl.1} parent=1 // pred_region
      %s89 = ssub.s32 2048, 2048
      %90 = vsyncadd [#allocation12], %s89
      %s91 = sshll.u32 [#allocation11], 4
      %s92 = int_to_ptr.vmem [resolvable:$true] %s91
      %97 = dma.hbm_to_vmem [thread:$0]  %s8, 2048, %s92, [#allocation12], 128, 128, 8
    $region37: #{_forward_impl.1} parent=1 // pred_fallthru
      _
    // Predicated region
    $region38: #{_forward_impl.1} parent=1 // pred_check
      _
    $region39: #{_forward_impl.1} parent=1 // pred_check_branch
      %99 = sbr.rel (0) target = $region41
    $region40: #{_forward_impl.1} parent=1 // pred_region
      _
    $region41: #{_forward_impl.1} parent=1 // pred_fallthru
      _
    // Predicated region
    $region42: #{_forward_impl.1} parent=1 // pred_check
      _
    $region43: #{_forward_impl.1} parent=1 // pred_check_branch
      %101 = sbr.rel (0) target = $region45
    $region44: #{_forward_impl.1} parent=1 // pred_region
      %102 = dma.done [#allocation3], 512
    $region45: #{_forward_impl.1} parent=1 // pred_fallthru
      _
    // Predicated region
    $region46: #{_forward_impl.1} parent=1 // pred_check
      _
    $region47: #{_forward_impl.1} parent=1 // pred_check_branch
      %104 = sbr.rel (0) target = $region49
    $region48: #{_forward_impl.1} parent=1 // pred_region
      %105 = dma.done [#allocation6], 256
    $region49: #{_forward_impl.1} parent=1 // pred_fallthru
      _
    // Predicated region
    $region50: #{_forward_impl.1} parent=1 // pred_check
      _
    $region51: #{_forward_impl.1} parent=1 // pred_check_branch
      %107 = sbr.rel (0) target = $region53
    $region52: #{_forward_impl.1} parent=1 // pred_region
      %108 = dma.done [#allocation6], 256
    $region53: #{_forward_impl.1} parent=1 // pred_fallthru
      _
    // Predicated region
    $region54: #{_forward_impl.1} parent=1 // pred_check
      _
    $region55: #{_forward_impl.1} parent=1 // pred_check_branch
      %110 = sbr.rel (0) target = $region57
    $region56: #{_forward_impl.1} parent=1 // pred_region
      %111 = dma.done [#allocation9], 256
    $region57: #{_forward_impl.1} parent=1 // pred_fallthru
      _
    // Predicated region
    $region58: #{_forward_impl.1} parent=1 // pred_check
      _
    $region59: #{_forward_impl.1} parent=1 // pred_check_branch
      %113 = sbr.rel (0) target = $region61
    $region60: #{_forward_impl.1} parent=1 // pred_region
      %114 = dma.done [#allocation9], 2048
    $region61: #{_forward_impl.1} parent=1 // pred_fallthru
      _
    // Predicated region
    $region62: #{_forward_impl.1} parent=1 // pred_check
      _
    $region63: #{_forward_impl.1} parent=1 // pred_check_branch
      %116 = sbr.rel (0) target = $region65
    $region64: #{_forward_impl.1} parent=1 // pred_region
      %117 = dma.done [#allocation12], 2048
    $region65: #{_forward_impl.1} parent=1 // pred_fallthru
      _
    %v119 = vld [vmem:[#allocation2] sm:$0xff]
    %v120 = vld [vmem:[#allocation2 + $0x8] sm:$0xff]
    %v121 = vld [vmem:[#allocation2 + $0x10] sm:$0xff]
    %v122 = vld [vmem:[#allocation2 + $0x18] sm:$0xff]
    %v123 = vpack.c.bf16 %v120, %v119
    %v124 = vpack.c.bf16 %v122, %v121
    %v125 = vld [vmem:[#allocation5] sm:$0xf]
    %v126 = vld [vmem:[#allocation5 + $0x4] sm:$0xf]
    %v127 = vld [vmem:[#allocation5 + $0x8] sm:$0xf]
    %v128 = vld [vmem:[#allocation5 + $0xc] sm:$0xf]
    %vm133 = vcmask 1046528
    %v134 = vrot.slane %v119, 1
    %v135 = vrot.slane %v120, 1
    %v136 = vsel %vm133, %v134, %v135
    %v137 = vrot.slane %v121, 1
    %v138 = vsel %vm133, %v135, %v137
    %v139 = vrot.slane %v122, 1
    %v140 = vsel %vm133, %v137, %v139
    %v146 = vsel %vm133, %v139, %v134
    %v147 = vpack.c.bf16 %v138, %v136
    %v148 = vpack.c.bf16 %v146, %v140
    %v149 = vld [vmem:[#allocation7] sm:$0xf]
    %v150 = vld [vmem:[#allocation7 + $0x4] sm:$0xf]
    %v151 = vld [vmem:[#allocation7 + $0x8] sm:$0xf]
    %v152 = vld [vmem:[#allocation7 + $0xc] sm:$0xf]
    %v157 = vunpack.c.l.b16 %v149
    %v158 = vunpack.c.l.b16 %v150
    %v159 = vunpack.c.l.b16 %v151
    %v160 = vunpack.c.l.b16 %v152
    %v161 = vpack.c.b16 %v158, %v157
    %v162 = vpack.c.b16 %v160, %v159
    %vm165 = vcmask 261120
    %v167 = vsel %vm165, %v147, 0
    %v170 = vsel %vm165, %v148, 0
    %172 = vmatprep.subr.bf16.mxu0 0
    %173 = vmatpush1.bf16.msra.mxu0 %v161
    %174 = vmatprep.subr.bf16.mxu0 0
    %175 = vmatpush1.bf16.msra.mxu0 %v162
    %176 = vmatprep.subr.bf16.mxu0 0
    %177 = vmatpush1.bf16.msra.mxu0 0
    %178 = vmatprep.subr.bf16.mxu0 0
    %179 = vmatpush1.bf16.msra.mxu0 0
    %180 = vmatprep.subr.bf16.mxu0 0
    %181 = vmatpush1.bf16.msra.mxu0 0
    %182 = vmatprep.subr.bf16.mxu0 0
    %183 = vmatpush1.bf16.msra.mxu0 0
    %184 = vmatprep.subr.bf16.mxu0 0
    %185 = vmatpush1.bf16.msra.mxu0 0
    %186 = vmatprep.subr.bf16.mxu0 0
    %187 = vmatpush1.bf16.msra.mxu0 0
    %188 = vmatprep.subr.bf16.mxu0 0
    %189 = vmatpush1.bf16.msra.mxu0 0
    %190 = vmatprep.subr.bf16.mxu0 0
    %191 = vmatpush1.bf16.msra.mxu0 0
    %192 = vmatprep.subr.bf16.mxu0 0
    %193 = vmatpush1.bf16.msra.mxu0 0
    %194 = vmatprep.subr.bf16.mxu0 0
    %195 = vmatpush1.bf16.msra.mxu0 0
    %196 = vmatprep.subr.bf16.mxu0 0
    %197 = vmatpush1.bf16.msra.mxu0 0
    %198 = vmatprep.subr.bf16.mxu0 0
    %199 = vmatpush1.bf16.msra.mxu0 0
    %200 = vmatprep.subr.bf16.mxu0 0
    %201 = vmatpush1.bf16.msra.mxu0 0
    %202 = vmatprep.subr.bf16.mxu0 0
    %203 = vmatpush1.bf16.msra.mxu0 0
    %204 = vmatprep.mubr.bf16.mxu0 0
    %205 = vmatmul.mubr.bf16.gmra.mrb[0].mxu0 %v167
    %v206 = vpop.f32.mrb[0].mxu0
    %v207 = vadd.f32 0.0, %v206
    %v208 = vpop.f32.mrb[0].mxu0
    %v209 = vpop.f32.mrb[0].mxu0
    %v210 = vadd.f32 0.0, %v209
    %v211 = vpop.f32.mrb[0].mxu0
    %212 = vmatprep.mubr.bf16.mxu0 0
    %213 = vmatmul.mubr.bf16.gmra.mrb[0].mxu0 %v170
    %v214 = vpop.f32.mrb[0].mxu0
    %v215 = vadd.f32 0.0, %v214
    %v216 = vpop.f32.mrb[0].mxu0
    %v217 = vpop.f32.mrb[0].mxu0
    %v218 = vadd.f32 0.0, %v217
    %v219 = vpop.f32.mrb[0].mxu0
    %220 = vdwg.mxu0
    %v225 = vunpack.c.l.b16 %v125
    %v226 = vunpack.c.l.b16 %v126
    %v227 = vunpack.c.l.b16 %v127
    %v228 = vunpack.c.l.b16 %v128
    %v229 = vpack.c.b16 %v226, %v225
    %v230 = vpack.c.b16 %v228, %v227
    %v234 = vsel %vm165, %v123, 0
    %v237 = vsel %vm165, %v124, 0
    %239 = vmatprep.subr.bf16.mxu0 0
    %240 = vmatpush1.bf16.msra.mxu0 %v229
    %241 = vmatprep.subr.bf16.mxu0 0
    %242 = vmatpush1.bf16.msra.mxu0 %v230
    %243 = vmatprep.subr.bf16.mxu0 0
    %244 = vmatpush1.bf16.msra.mxu0 0
    %245 = vmatprep.subr.bf16.mxu0 0
    %246 = vmatpush1.bf16.msra.mxu0 0
    %247 = vmatprep.subr.bf16.mxu0 0
    %248 = vmatpush1.bf16.msra.mxu0 0
    %249 = vmatprep.subr.bf16.mxu0 0
    %250 = vmatpush1.bf16.msra.mxu0 0
    %251 = vmatprep.subr.bf16.mxu0 0
    %252 = vmatpush1.bf16.msra.mxu0 0
    %253 = vmatprep.subr.bf16.mxu0 0
    %254 = vmatpush1.bf16.msra.mxu0 0
    %255 = vmatprep.subr.bf16.mxu0 0
    %256 = vmatpush1.bf16.msra.mxu0 0
    %257 = vmatprep.subr.bf16.mxu0 0
    %258 = vmatpush1.bf16.msra.mxu0 0
    %259 = vmatprep.subr.bf16.mxu0 0
    %260 = vmatpush1.bf16.msra.mxu0 0
    %261 = vmatprep.subr.bf16.mxu0 0
    %262 = vmatpush1.bf16.msra.mxu0 0
    %263 = vmatprep.subr.bf16.mxu0 0
    %264 = vmatpush1.bf16.msra.mxu0 0
    %265 = vmatprep.subr.bf16.mxu0 0
    %266 = vmatpush1.bf16.msra.mxu0 0
    %267 = vmatprep.subr.bf16.mxu0 0
    %268 = vmatpush1.bf16.msra.mxu0 0
    %269 = vmatprep.subr.bf16.mxu0 0
    %270 = vmatpush1.bf16.msra.mxu0 0
    %271 = vmatprep.mubr.bf16.mxu0 0
    %272 = vmatmul.mubr.bf16.gmra.mrb[0].mxu0 %v234
    %v273 = vpop.f32.mrb[0].mxu0
    %v274 = vadd.f32 %v207, %v273
    %v275 = vpop.f32.mrb[0].mxu0
    %v276 = vpop.f32.mrb[0].mxu0
    %v277 = vadd.f32 %v210, %v276
    %v278 = vpop.f32.mrb[0].mxu0
    %279 = vmatprep.mubr.bf16.mxu0 0
    %280 = vmatmul.mubr.bf16.gmra.mrb[0].mxu0 %v237
    %v281 = vpop.f32.mrb[0].mxu0
    %v282 = vadd.f32 %v215, %v281
    %v283 = vpop.f32.mrb[0].mxu0
    %v284 = vpop.f32.mrb[0].mxu0
    %v285 = vadd.f32 %v218, %v284
    %v286 = vpop.f32.mrb[0].mxu0
    %287 = vdwg.mxu0
    %vm288 = vcmask 1045504
    %v289 = vrot.slane %v119, 2
    %v290 = vrot.slane %v120, 2
    %v291 = vsel %vm288, %v289, %v290
    %v292 = vrot.slane %v121, 2
    %v293 = vsel %vm288, %v290, %v292
    %v294 = vrot.slane %v122, 2
    %v295 = vsel %vm288, %v292, %v294
    %v301 = vsel %vm288, %v294, %v289
    %v302 = vpack.c.bf16 %v293, %v291
    %v303 = vpack.c.bf16 %v301, %v295
    %v304 = vld [vmem:[#allocation8] sm:$0xf]
    %v305 = vld [vmem:[#allocation8 + $0x4] sm:$0xf]
    %v306 = vld [vmem:[#allocation8 + $0x8] sm:$0xf]
    %v307 = vld [vmem:[#allocation8 + $0xc] sm:$0xf]
    %v312 = vunpack.c.l.b16 %v304
    %v313 = vunpack.c.l.b16 %v305
    %v314 = vunpack.c.l.b16 %v306
    %v315 = vunpack.c.l.b16 %v307
    %v316 = vpack.c.b16 %v313, %v312
    %v317 = vpack.c.b16 %v315, %v314
    %v321 = vsel %vm165, %v302, 0
    %v324 = vsel %vm165, %v303, 0
    %326 = vmatprep.subr.bf16.mxu0 0
    %327 = vmatpush1.bf16.msra.mxu0 %v316
    %328 = vmatprep.subr.bf16.mxu0 0
    %329 = vmatpush1.bf16.msra.mxu0 %v317
    %330 = vmatprep.subr.bf16.mxu0 0
    %331 = vmatpush1.bf16.msra.mxu0 0
    %332 = vmatprep.subr.bf16.mxu0 0
    %333 = vmatpush1.bf16.msra.mxu0 0
    %334 = vmatprep.subr.bf16.mxu0 0
    %335 = vmatpush1.bf16.msra.mxu0 0
    %336 = vmatprep.subr.bf16.mxu0 0
    %337 = vmatpush1.bf16.msra.mxu0 0
    %338 = vmatprep.subr.bf16.mxu0 0
    %339 = vmatpush1.bf16.msra.mxu0 0
    %340 = vmatprep.subr.bf16.mxu0 0
    %341 = vmatpush1.bf16.msra.mxu0 0
    %342 = vmatprep.subr.bf16.mxu0 0
    %343 = vmatpush1.bf16.msra.mxu0 0
    %344 = vmatprep.subr.bf16.mxu0 0
    %345 = vmatpush1.bf16.msra.mxu0 0
    %346 = vmatprep.subr.bf16.mxu0 0
    %347 = vmatpush1.bf16.msra.mxu0 0
    %348 = vmatprep.subr.bf16.mxu0 0
    %349 = vmatpush1.bf16.msra.mxu0 0
    %350 = vmatprep.subr.bf16.mxu0 0
    %351 = vmatpush1.bf16.msra.mxu0 0
    %352 = vmatprep.subr.bf16.mxu0 0
    %353 = vmatpush1.bf16.msra.mxu0 0
    %354 = vmatprep.subr.bf16.mxu0 0
    %355 = vmatpush1.bf16.msra.mxu0 0
    %356 = vmatprep.subr.bf16.mxu0 0
    %357 = vmatpush1.bf16.msra.mxu0 0
    %358 = vmatprep.mubr.bf16.mxu0 0
    %359 = vmatmul.mubr.bf16.gmra.mrb[0].mxu0 %v321
    %v360 = vpop.f32.mrb[0].mxu0
    %v361 = vadd.f32 0.0, %v360
    %v362 = vpop.f32.mrb[0].mxu0
    %v363 = vpop.f32.mrb[0].mxu0
    %v364 = vadd.f32 0.0, %v363
    %v365 = vpop.f32.mrb[0].mxu0
    %366 = vmatprep.mubr.bf16.mxu0 0
    %367 = vmatmul.mubr.bf16.gmra.mrb[0].mxu0 %v324
    %v368 = vpop.f32.mrb[0].mxu0
    %v369 = vadd.f32 0.0, %v368
    %v370 = vpop.f32.mrb[0].mxu0
    %v371 = vpop.f32.mrb[0].mxu0
    %v372 = vadd.f32 0.0, %v371
    %v373 = vpop.f32.mrb[0].mxu0
    %374 = vdwg.mxu0
    %v375 = vadd.f32 %v274, %v361
    %v376 = vadd.f32 %v277, %v364
    %v377 = vadd.f32 %v282, %v369
    %v378 = vadd.f32 %v285, %v372
    %v379 = vld [vmem:[%s4] sm:$0x1]
    %v381 = vlaneseq
    %v382 = vshrl.u32 %v381, 7
    %v383 = vsub.s32 0, %v382
    %v384 = vrot.slane %v379, %v383
    %v386 = vadd.f32 %v375, %v384
    %v387 = vadd.f32 %v376, %v384
    %v388 = vadd.f32 %v377, %v384
    %v389 = vadd.f32 %v378, %v384
    %v390 = vmax.f32 %v386, 0.0
    %v391 = vmax.f32 %v387, 0.0
    %v392 = vmax.f32 %v388, 0.0
    %v393 = vmax.f32 %v389, 0.0
    %v394 = vld [vmem:[%s5] sm:$0xff]
    %v395 = vld [vmem:[%s5 + $0x8] sm:$0xff]
    %v396 = vmul.f32 %v390, %v394
    %v397 = vmul.f32 %v391, %v395
    %v398 = vmul.f32 %v392, %v394
    %v399 = vmul.f32 %v393, %v395
    %v400 = vmax.f32 %v396, %v397
    %v401 = vrot.slane %v400, 4
    %v402 = vmax.f32 %v400, %v401
    %v403 = vrot.slane %v402, 2
    %v404 = vmax.f32 %v402, %v403
    %v405 = vrot.slane %v404, 1
    %v406 = vmax.f32 %v404, %v405
    %v407 = vmax.f32 %v398, %v399
    %v408 = vrot.slane %v407, 4
    %v409 = vmax.f32 %v407, %v408
    %v410 = vrot.slane %v409, 2
    %v411 = vmax.f32 %v409, %v410
    %v412 = vrot.slane %v411, 1
    %v413 = vmax.f32 %v411, %v412
    %v414 = vld [vmem:[#allocation10] sm:$0xff]
    %v415 = vld [vmem:[#allocation10 + $0x8] sm:$0xff]
    %v416 = vld [vmem:[#allocation10 + $0x10] sm:$0xff]
    %v417 = vld [vmem:[#allocation10 + $0x18] sm:$0xff]
    %v418 = vld [vmem:[#allocation10 + $0x20] sm:$0xff]
    %v419 = vld [vmem:[#allocation10 + $0x28] sm:$0xff]
    %v420 = vld [vmem:[#allocation10 + $0x30] sm:$0xff]
    %v421 = vld [vmem:[#allocation10 + $0x38] sm:$0xff]
    %v422 = vld [vmem:[#allocation10 + $0x40] sm:$0xff]
    %v423 = vld [vmem:[#allocation10 + $0x48] sm:$0xff]
    %v424 = vld [vmem:[#allocation10 + $0x50] sm:$0xff]
    %v425 = vld [vmem:[#allocation10 + $0x58] sm:$0xff]
    %v426 = vld [vmem:[#allocation10 + $0x60] sm:$0xff]
    %v427 = vld [vmem:[#allocation10 + $0x68] sm:$0xff]
    %v428 = vld [vmem:[#allocation10 + $0x70] sm:$0xff]
    %v429 = vld [vmem:[#allocation10 + $0x78] sm:$0xff]
    %v430 = vld [vmem:[%s7] sm:$0x1]
    %v432 = vlaneseq
    %v433 = vshrl.u32 %v432, 7
    %v434 = vsub.s32 0, %v433
    %v435 = vrot.slane %v430, %v434
    %vm439 = vcmask 1041409
    %v440 = vsel %vm439, %v413, %v406
    %442 = vmatprep.subr.mxu0 0.0
    %443 = vmatpush1.msra.mxu0 %v414
    %444 = vmatprep.subr.mxu0 0.0
    %445 = vmatpush1.msra.mxu0 %v415
    %446 = vmatprep.subr.mxu0 0.0
    %447 = vmatpush1.msra.mxu0 %v416
    %448 = vmatprep.subr.mxu0 0.0
    %449 = vmatpush1.msra.mxu0 %v417
    %450 = vmatprep.subr.mxu0 0.0
    %451 = vmatpush1.msra.mxu0 %v418
    %452 = vmatprep.subr.mxu0 0.0
    %453 = vmatpush1.msra.mxu0 %v419
    %454 = vmatprep.subr.mxu0 0.0
    %455 = vmatpush1.msra.mxu0 %v420
    %456 = vmatprep.subr.mxu0 0.0
    %457 = vmatpush1.msra.mxu0 %v421
    %458 = vmatprep.subr.mxu0 0.0
    %459 = vmatpush1.msra.mxu0 %v422
    %460 = vmatprep.subr.mxu0 0.0
    %461 = vmatpush1.msra.mxu0 %v423
    %462 = vmatprep.subr.mxu0 0.0
    %463 = vmatpush1.msra.mxu0 %v424
    %464 = vmatprep.subr.mxu0 0.0
    %465 = vmatpush1.msra.mxu0 %v425
    %466 = vmatprep.subr.mxu0 0.0
    %467 = vmatpush1.msra.mxu0 %v426
    %468 = vmatprep.subr.mxu0 0.0
    %469 = vmatpush1.msra.mxu0 %v427
    %470 = vmatprep.subr.mxu0 0.0
    %471 = vmatpush1.msra.mxu0 %v428
    %472 = vmatprep.subr.mxu0 0.0
    %473 = vmatpush1.msra.mxu0 %v429
    %474 = vmatprep.subr.mxu0 0.0
    %475 = vmatpush1.msra.mxu0 0.0
    %476 = vmatprep.subr.mxu0 0.0
    %477 = vmatpush1.msra.mxu0 0.0
    %478 = vmatprep.subr.mxu0 0.0
    %479 = vmatpush1.msra.mxu0 0.0
    %480 = vmatprep.subr.mxu0 0.0
    %481 = vmatpush1.msra.mxu0 0.0
    %482 = vmatprep.subr.mxu0 0.0
    %483 = vmatpush1.msra.mxu0 0.0
    %484 = vmatprep.subr.mxu0 0.0
    %485 = vmatpush1.msra.mxu0 0.0
    %486 = vmatprep.subr.mxu0 0.0
    %487 = vmatpush1.msra.mxu0 0.0
    %488 = vmatprep.subr.mxu0 0.0
    %489 = vmatpush1.msra.mxu0 0.0
    %490 = vmatprep.subr.mxu0 0.0
    %491 = vmatpush1.msra.mxu0 0.0
    %492 = vmatprep.subr.mxu0 0.0
    %493 = vmatpush1.msra.mxu0 0.0
    %494 = vmatprep.subr.mxu0 0.0
    %495 = vmatpush1.msra.mxu0 0.0
    %496 = vmatprep.subr.mxu0 0.0
    %497 = vmatpush1.msra.mxu0 0.0
    %498 = vmatprep.subr.mxu0 0.0
    %499 = vmatpush1.msra.mxu0 0.0
    %500 = vmatprep.subr.mxu0 0.0
    %501 = vmatpush1.msra.mxu0 0.0
    %502 = vmatprep.subr.mxu0 0.0
    %503 = vmatpush1.msra.mxu0 0.0
    %504 = vmatprep.subr.mxu0 0.0
    %505 = vmatpush1.msra.mxu0 0.0
    %506 = vmatprep.mubr.f32.mxu0 0.0
    %507 = vmatmul.mubr.f32.gmra.mrb[0].mxu0 %v440
    %v508 = vpop.f32.mrb[0].mxu0
    %v509 = vadd.f32 %v435, %v508
    %v510 = vpop.f32.mrb[0].mxu0
    %511 = vdwg.mxu0
    %v512 = vxor.u32 %v509, 2147483648
    %v513 = vmul.f32 %v512, 1.442695
    %v514 = vpow.pop %v513
    %v515 = vadd.f32 %v514, 1.0
    %v516 = vrcp.pop %v515
    %v517 = vmul.f32 1.0, %v516
    %v518 = vmax.f32 %v509, 0.0
    %v519 = vmul.f32 %v517, %v518
    %v520 = vsub.f32 1.0, %v517
    %v521 = vmul.f32 %v520, %v440
    %v522 = vadd.f32 %v519, %v521
    %v523 = vld [vmem:[#allocation11] sm:$0xff]
    %v524 = vld [vmem:[#allocation11 + $0x8] sm:$0xff]
    %v525 = vld [vmem:[#allocation11 + $0x10] sm:$0xff]
    %v526 = vld [vmem:[#allocation11 + $0x18] sm:$0xff]
    %v527 = vld [vmem:[#allocation11 + $0x20] sm:$0xff]
    %v528 = vld [vmem:[#allocation11 + $0x28] sm:$0xff]
    %v529 = vld [vmem:[#allocation11 + $0x30] sm:$0xff]
    %v530 = vld [vmem:[#allocation11 + $0x38] sm:$0xff]
    %v531 = vld [vmem:[#allocation11 + $0x40] sm:$0xff]
    %v532 = vld [vmem:[#allocation11 + $0x48] sm:$0xff]
    %v533 = vld [vmem:[#allocation11 + $0x50] sm:$0xff]
    %v534 = vld [vmem:[#allocation11 + $0x58] sm:$0xff]
    %v535 = vld [vmem:[#allocation11 + $0x60] sm:$0xff]
    %v536 = vld [vmem:[#allocation11 + $0x68] sm:$0xff]
    %v537 = vld [vmem:[#allocation11 + $0x70] sm:$0xff]
    %v538 = vld [vmem:[#allocation11 + $0x78] sm:$0xff]
    %v539 = vld [vmem:[%s9] sm:$0x1]
    %v541 = vlaneseq
    %v542 = vshrl.u32 %v541, 7
    %v543 = vsub.s32 0, %v542
    %v544 = vrot.slane %v539, %v543
    %546 = vmatprep.subr.mxu0 0.0
    %547 = vmatpush1.msra.mxu0 %v523
    %548 = vmatprep.subr.mxu0 0.0
    %549 = vmatpush1.msra.mxu0 %v524
    %550 = vmatprep.subr.mxu0 0.0
    %551 = vmatpush1.msra.mxu0 %v525
    %552 = vmatprep.subr.mxu0 0.0
    %553 = vmatpush1.msra.mxu0 %v526
    %554 = vmatprep.subr.mxu0 0.0
    %555 = vmatpush1.msra.mxu0 %v527
    %556 = vmatprep.subr.mxu0 0.0
    %557 = vmatpush1.msra.mxu0 %v528
    %558 = vmatprep.subr.mxu0 0.0
    %559 = vmatpush1.msra.mxu0 %v529
    %560 = vmatprep.subr.mxu0 0.0
    %561 = vmatpush1.msra.mxu0 %v530
    %562 = vmatprep.subr.mxu0 0.0
    %563 = vmatpush1.msra.mxu0 %v531
    %564 = vmatprep.subr.mxu0 0.0
    %565 = vmatpush1.msra.mxu0 %v532
    %566 = vmatprep.subr.mxu0 0.0
    %567 = vmatpush1.msra.mxu0 %v533
    %568 = vmatprep.subr.mxu0 0.0
    %569 = vmatpush1.msra.mxu0 %v534
    %570 = vmatprep.subr.mxu0 0.0
    %571 = vmatpush1.msra.mxu0 %v535
    %572 = vmatprep.subr.mxu0 0.0
    %573 = vmatpush1.msra.mxu0 %v536
    %574 = vmatprep.subr.mxu0 0.0
    %575 = vmatpush1.msra.mxu0 %v537
    %576 = vmatprep.subr.mxu0 0.0
    %577 = vmatpush1.msra.mxu0 %v538
    %578 = vmatprep.subr.mxu0 0.0
    %579 = vmatpush1.msra.mxu0 0.0
    %580 = vmatprep.subr.mxu0 0.0
    %581 = vmatpush1.msra.mxu0 0.0
    %582 = vmatprep.subr.mxu0 0.0
    %583 = vmatpush1.msra.mxu0 0.0
    %584 = vmatprep.subr.mxu0 0.0
    %585 = vmatpush1.msra.mxu0 0.0
    %586 = vmatprep.subr.mxu0 0.0
    %587 = vmatpush1.msra.mxu0 0.0
    %588 = vmatprep.subr.mxu0 0.0
    %589 = vmatpush1.msra.mxu0 0.0
    %590 = vmatprep.subr.mxu0 0.0
    %591 = vmatpush1.msra.mxu0 0.0
    %592 = vmatprep.subr.mxu0 0.0
    %593 = vmatpush1.msra.mxu0 0.0
    %594 = vmatprep.subr.mxu0 0.0
    %595 = vmatpush1.msra.mxu0 0.0
    %596 = vmatprep.subr.mxu0 0.0
    %597 = vmatpush1.msra.mxu0 0.0
    %598 = vmatprep.subr.mxu0 0.0
    %599 = vmatpush1.msra.mxu0 0.0
    %600 = vmatprep.subr.mxu0 0.0
    %601 = vmatpush1.msra.mxu0 0.0
    %602 = vmatprep.subr.mxu0 0.0
    %603 = vmatpush1.msra.mxu0 0.0
    %604 = vmatprep.subr.mxu0 0.0
    %605 = vmatpush1.msra.mxu0 0.0
    %606 = vmatprep.subr.mxu0 0.0
    %607 = vmatpush1.msra.mxu0 0.0
    %608 = vmatprep.subr.mxu0 0.0
    %609 = vmatpush1.msra.mxu0 0.0
    %610 = vmatprep.mubr.f32.mxu0 0.0
    %611 = vmatmul.mubr.f32.gmra.mrb[0].mxu0 %v522
    %v612 = vpop.f32.mrb[0].mxu0
    %v613 = vadd.f32 %v544, %v612
    %v614 = vpop.f32.mrb[0].mxu0
    %615 = vdwg.mxu0
    %616 = vst [vmem:[#allocation13] sm:$0x3] %v613
    // Predicated region
    $region66: #{_forward_impl.1} parent=1 // pred_check
      _
    $region67: #{_forward_impl.1} parent=1 // pred_check_branch
      %618 = sbr.rel (0) target = $region69
    $region68: #{_forward_impl.1} parent=1 // pred_region
      %s620 = ssub.s32 32, 32
      %621 = vsyncadd [#allocation4], %s620
      %s623 = sshll.u32 [#allocation13], 4
      %s624 = int_to_ptr.vmem [resolvable:$true] %s623
      %626 = dma.vmem_to_hbm [thread:$0]  %s624, 32, %s10, [#allocation4]
    $region69: #{_forward_impl.1} parent=1 // pred_fallthru
      _
    // Predicated region
    $region70: #{_forward_impl.1} parent=1 // pred_check
      _
    $region71: #{_forward_impl.1} parent=1 // pred_check_branch
      %628 = sbr.rel (0) target = $region73
    $region72: #{_forward_impl.1} parent=1 // pred_region
      %629 = dma.done [#allocation4], 32
    $region73: #{_forward_impl.1} parent=1 // pred_fallthru
      _
    %630 = vsyncpa [#allocation3], 1
    %631 = vsyncpa [#allocation6], 1
    %632 = vsyncpa [#allocation9], 1
    %633 = vsyncpa [#allocation12], 1
    %634 = vsyncpa [#allocation4], 1

</llo_original>
